<compile_context>
chip_gen: v6e
topology: v6e:2x2x1
jax: 0.10.0
libtpu: 0.0.40
codegen_flags: <defaults>
</compile_context>

<pallas_src>
import functools

import jax
import jax.numpy as jnp
from jax import lax
from jax.experimental import pallas as pl
from jax.experimental.pallas import tpu as pltpu


# ---------------------------------------------------------------------------------
# Fused kernel: CharCNN (im2col matmul) + max-pool + word projection + concat
#               + 2-layer Highway, over a block of TN words.
# ---------------------------------------------------------------------------------
def embedding_kernel(
    xc_ref,                              # (TN, W_out, KEp)  bf16  im2col char patches
    wc_ref,                              # (KEp, C)          bf16  conv weight (im2col layout)
    bc_ref,                              # (1, C)            f32   conv bias
    we_ref,                              # (TN, E)           f32   word embeddings
    wp_ref,                              # (E, H)            f32   projection weight (pre-transposed)
    wt1_ref, bt1_ref, wg1_ref, bg1_ref,  # highway layer 1: (2E,2E)/(1,2E)
    wt2_ref, bt2_ref, wg2_ref, bg2_ref,  # highway layer 2: (2E,2E)/(1,2E)
    o_ref,                               # (TN, H + C)       f32   final embedding block
):
    # --- char path: one MXU matmul (contraction on lanes), f32 accumulation -------
    conv = lax.dot_general(
        xc_ref[...], wc_ref[...],
        dimension_numbers=(((2,), (0,)), ((), ())),
        preferred_element_type=jnp.float32,
    )                                                   # (TN, W_out, C)
    # F.max_pool1d over all word positions + conv bias (bias is per-channel, so
    # adding it after the max is equivalent and cheaper).
    pooled = jnp.max(conv, axis=1) + bc_ref[...]        # (TN, C)

    # --- word path: bias-free projection ------------------------------------------
    proj = jnp.dot(we_ref[...], wp_ref[...],
                   preferred_element_type=jnp.float32)  # (TN, H)

    # --- concat + 2-layer Highway --------------------------------------------------
    h = jnp.concatenate([proj, pooled], axis=-1)        # (TN, H + C)

    def highway(h, wt, bt, wg, bg):
        t = jax.nn.relu(jnp.dot(h, wt, preferred_element_type=jnp.float32) + bt)
        g = jax.nn.sigmoid(jnp.dot(h, wg, preferred_element_type=jnp.float32) + bg)
        return h * (1.0 - g) + g * t

    h = highway(h, wt1_ref[...], bt1_ref[...], wg1_ref[...], bg1_ref[...])
    h = highway(h, wt2_ref[...], bt2_ref[...], wg2_ref[...], bg2_ref[...])
    o_ref[...] = h.astype(o_ref.dtype)


@functools.partial(jax.jit, static_argnames=("tile_n",))
def embedding_forward(word_ids, char_ids, params, tile_n=8):
    """PyTorch `Embedding.forward` equivalent (eval mode: dropout == identity)."""
    B, S = word_ids.shape
    L = char_ids.shape[2]
    glove, cemb = params["glove"], params["cembed"]
    E, Ec = glove.shape[1], cemb.shape[1]
    conv_w, conv_b = params["conv_w"], params["conv_b"]
    C, K = conv_w.shape[0], conv_w.shape[3]
    W_out = L - K + 1
    Nw = B * S
    assert Nw % tile_n == 0, "batch*seq must be a multiple of tile_n"

    # Embedding lookups + (eval-mode) dropout stay in XLA.
    # TODO(synk): an in-kernel embedding gather would need scalar-prefetch / manual DMA row gather.
    we = glove[word_ids].reshape(Nw, E).astype(jnp.float32)
    ce = cemb[char_ids]                                              # (B, S, L, Ec)

    # Faithful to torch `.view(-1, char_embed_size, L)`: a raw row-major reshape.
    X = ce.reshape(Nw, Ec, L)
    Xt = jnp.transpose(X, (0, 2, 1))                                 # (Nw, L, Ec): contraction dim -> lanes

    # im2col: col[n, w, k*Ec + e] = X[n, e, w + k]; pad the contraction to 128 lanes.
    cols = jnp.stack([Xt[:, k:k + W_out, :] for k in range(K)], axis=2)
    cols = cols.reshape(Nw, W_out, K * Ec)
    KEp = max(128, pl.cdiv(K * Ec, 128) * 128)
    cols = jnp.pad(cols, ((0, 0), (0, 0), (0, KEp - K * Ec))).astype(jnp.bfloat16)

    # Conv weight in the matching (k-major, e-minor) im2col layout, zero-padded rows.
    wc = jnp.transpose(conv_w[:, 0, :, :], (2, 1, 0)).reshape(K * Ec, C)
    wc = jnp.pad(wc, ((0, KEp - K * Ec), (0, 0))).astype(jnp.bfloat16)
    bc = conv_b.reshape(1, C).astype(jnp.float32)

    wp = params["proj_w"].T.astype(jnp.float32)                      # (E, H): kernel does x @ wp
    H = wp.shape[1]
    D = H + C                                                        # = 2 * embed_size

    hw = []
    for i in range(2):
        hw += [params["hw_t_w"][i].T.astype(jnp.float32),
               params["hw_t_b"][i].reshape(1, D).astype(jnp.float32),
               params["hw_g_w"][i].T.astype(jnp.float32),
               params["hw_g_b"][i].reshape(1, D).astype(jnp.float32)]

    def const_spec(a):
        # Whole-array block, same block every grid step (stays resident in VMEM).
        return pl.BlockSpec(a.shape, lambda i, nd=a.ndim: (0,) * nd)

    out = pl.pallas_call(
        embedding_kernel,
        out_shape=jax.ShapeDtypeStruct((Nw, D), jnp.float32),
        grid=(Nw // tile_n,),
        in_specs=[
            pl.BlockSpec((tile_n, W_out, KEp), lambda i: (i, 0, 0)),
            const_spec(wc), const_spec(bc),
            pl.BlockSpec((tile_n, E), lambda i: (i, 0)),
            const_spec(wp),
        ] + [const_spec(a) for a in hw],
        out_specs=pl.BlockSpec((tile_n, D), lambda i: (i, 0)),
        compiler_params=pltpu.CompilerParams(dimension_semantics=("parallel",)),
    )(cols, wc, bc, we, wp, *hw)

    return out.reshape(B, S, D)


# ---------------------------------------------------------------------------------
# Pure-JAX reference of the PyTorch module (conv operands bf16-rounded like the kernel).
# ---------------------------------------------------------------------------------
def reference_forward(word_ids, char_ids, params):
    B, S = word_ids.shape
    L = char_ids.shape[2]
    glove, cemb = params["glove"], params["cembed"]
    Ec = cemb.shape[1]
    conv_w, conv_b = params["conv_w"], params["conv_b"]
    C = conv_w.shape[0]
    Nw = B * S
    hi = lax.Precision.HIGHEST

    wproj = jnp.dot(glove[word_ids], params["proj_w"].T, precision=hi)      # (B, S, H)

    ce = cemb[char_ids].reshape(Nw, Ec, L)[:, None, :, :]                   # torch .view + unsqueeze(1)
    x = ce.astype(jnp.bfloat16).astype(jnp.float32)                         # match kernel's bf16 conv operands
    w = conv_w.astype(jnp.bfloat16).astype(jnp.float32)
    conv = lax.conv_general_dilated(
        x, w, window_strides=(1, 1), padding="VALID",
        dimension_numbers=("NCHW", "OIHW", "NCHW"), precision=hi,
    ) + conv_b[None, :, None, None]                                         # (Nw, C, 1, W_out)
    pooled = jnp.max(conv[:, :, 0, :], axis=-1)                             # squeeze + max_pool1d + squeeze
    cfeat = pooled.reshape(B, S, C)

    h = jnp.concatenate([wproj, cfeat], axis=-1)
    for i in range(2):
        t = jax.nn.relu(jnp.dot(h, params["hw_t_w"][i].T, precision=hi) + params["hw_t_b"][i])
        g = jax.nn.sigmoid(jnp.dot(h, params["hw_g_w"][i].T, precision=hi) + params["hw_g_b"][i])
        h = h * (1.0 - g) + g * t
    return h


if __name__ == "__main__":
    # Small shapes consistent with BIDAF.Embedding.
    B, S = 2, 8            # batch, sequence length  -> Nw = 16 words
    L = 16                 # max_word_length
    Ec = 16                # char_embed_size
    E = 32                 # embed_size (GloVe dim == CharCNN out channels)
    H = 32                 # hidden_size (== embed_size, required by Highway(2*embed))
    K = 5                  # CharCNN kernel_size
    Vw, Vc = 100, 64       # word / char vocab sizes

    keys = jax.random.split(jax.random.PRNGKey(0), 16)

    glove = jax.random.normal(keys[0], (Vw, E), jnp.float32)
    cembed = 0.1 * jax.random.normal(keys[1], (Vc, Ec), jnp.float32)
    cembed = cembed.at[1].set(0.0)                                   # nn.Embedding(padding_idx=1)

    fan_in = 1 * Ec * K
    bcv = 1.0 / fan_in ** 0.5
    conv_w = jax.random.uniform(keys[2], (E, 1, Ec, K), jnp.float32, -bcv, bcv)
    conv_b = jax.random.uniform(keys[3], (E,), jnp.float32, -bcv, bcv)

    bpv = 1.0 / E ** 0.5
    proj_w = jax.random.uniform(keys[4], (H, E), jnp.float32, -bpv, bpv)

    bhv = 1.0 / (2 * E) ** 0.5
    hw_t_w = [jax.random.uniform(keys[5 + i], (2 * E, 2 * E), jnp.float32, -bhv, bhv) for i in range(2)]
    hw_t_b = [jax.random.uniform(keys[7 + i], (2 * E,), jnp.float32, -bhv, bhv) for i in range(2)]
    hw_g_w = [jax.random.uniform(keys[9 + i], (2 * E, 2 * E), jnp.float32, -bhv, bhv) for i in range(2)]
    hw_g_b = [jax.random.uniform(keys[11 + i], (2 * E,), jnp.float32, -bhv, bhv) for i in range(2)]

    params = dict(glove=glove, cembed=cembed, conv_w=conv_w, conv_b=conv_b,
                  proj_w=proj_w, hw_t_w=hw_t_w, hw_t_b=hw_t_b,
                  hw_g_w=hw_g_w, hw_g_b=hw_g_b)

    word_ids = jax.random.randint(keys[13], (B, S), 0, Vw)
    char_ids = jax.random.randint(keys[14], (B, S, L), 0, Vc)

    out = embedding_forward(word_ids, char_ids, params)
    out = jax.block_until_ready(out)
    assert out.shape == (B, S, 2 * E), out.shape

    ref = reference_forward(word_ids, char_ids, params)
    err = float(jnp.max(jnp.abs(out - ref)))
    # bf16 conv operands (and possibly reduced-precision f32 MXU passes) -> bf16-level tolerance.
    assert jnp.allclose(out, ref, atol=5e-2, rtol=5e-2), err

    print("KERNEL_OK")
</pallas_src>

<mosaic_0001>
module attributes {stable_mosaic.version = 11 : i64} {
  func.func @embedding_kernel(%arg0: i32, %arg1: memref<8x12x128xbf16, #tpu.memory_space<vmem>>, %arg2: memref<128x32xbf16, #tpu.memory_space<vmem>>, %arg3: memref<1x32xf32, #tpu.memory_space<vmem>>, %arg4: memref<8x32xf32, #tpu.memory_space<vmem>>, %arg5: memref<32x32xf32, #tpu.memory_space<vmem>>, %arg6: memref<64x64xf32, #tpu.memory_space<vmem>>, %arg7: memref<1x64xf32, #tpu.memory_space<vmem>>, %arg8: memref<64x64xf32, #tpu.memory_space<vmem>>, %arg9: memref<1x64xf32, #tpu.memory_space<vmem>>, %arg10: memref<64x64xf32, #tpu.memory_space<vmem>>, %arg11: memref<1x64xf32, #tpu.memory_space<vmem>>, %arg12: memref<64x64xf32, #tpu.memory_space<vmem>>, %arg13: memref<1x64xf32, #tpu.memory_space<vmem>>, %arg14: memref<8x64xf32, #tpu.memory_space<vmem>>) attributes {dimension_semantics = [#tpu.dimension_semantics<parallel>], iteration_bounds = array<i64: 2>, scalar_prefetch = 0 : i64, scratch_operands = 0 : i64, tpu.core_type = #tpu.core_type<tc>, window_params = [{transform_indices = @transform_0, window_bounds = array<i64: 8, 12, 128>}, {pipeline_mode = #tpu.pipeline_mode<synchronous>, transform_indices = @transform_1, window_bounds = array<i64: 128, 32>}, {pipeline_mode = #tpu.pipeline_mode<synchronous>, transform_indices = @transform_2, window_bounds = array<i64: 1, 32>}, {transform_indices = @transform_3, window_bounds = array<i64: 8, 32>}, {pipeline_mode = #tpu.pipeline_mode<synchronous>, transform_indices = @transform_4, window_bounds = array<i64: 32, 32>}, {pipeline_mode = #tpu.pipeline_mode<synchronous>, transform_indices = @transform_5, window_bounds = array<i64: 64, 64>}, {pipeline_mode = #tpu.pipeline_mode<synchronous>, transform_indices = @transform_6, window_bounds = array<i64: 1, 64>}, {pipeline_mode = #tpu.pipeline_mode<synchronous>, transform_indices = @transform_7, window_bounds = array<i64: 64, 64>}, {pipeline_mode = #tpu.pipeline_mode<synchronous>, transform_indices = @transform_8, window_bounds = array<i64: 1, 64>}, {pipeline_mode = #tpu.pipeline_mode<synchronous>, transform_indices = @transform_9, window_bounds = array<i64: 64, 64>}, {pipeline_mode = #tpu.pipeline_mode<synchronous>, transform_indices = @transform_10, window_bounds = array<i64: 1, 64>}, {pipeline_mode = #tpu.pipeline_mode<synchronous>, transform_indices = @transform_11, window_bounds = array<i64: 64, 64>}, {pipeline_mode = #tpu.pipeline_mode<synchronous>, transform_indices = @transform_12, window_bounds = array<i64: 1, 64>}, {transform_indices = @transform_13, window_bounds = array<i64: 8, 64>}]} {
    %c0 = arith.constant 0 : index
    %c0_0 = arith.constant 0 : index
    %c0_1 = arith.constant 0 : index
    %0 = vector.load %arg1[%c0, %c0_0, %c0_1] : memref<8x12x128xbf16, #tpu.memory_space<vmem>>, vector<8x12x128xbf16>
    %c0_2 = arith.constant 0 : index
    %c0_3 = arith.constant 0 : index
    %1 = vector.load %arg2[%c0_2, %c0_3] : memref<128x32xbf16, #tpu.memory_space<vmem>>, vector<128x32xbf16>
    %cst = arith.constant dense<0.000000e+00> : vector<8x12x32xf32>
    %2 = tpu.matmul %0, %1, %cst {dimension_numbers = #tpu.dot_dimension_numbers<[2], [0], [0, 1], [1], [0, 0, 0, 1, 1, 1], [], []>} : vector<8x12x128xbf16>, vector<128x32xbf16>, vector<8x12x32xf32> -> vector<8x12x32xf32>
    %cst_4 = arith.constant dense<0xFF800000> : vector<8x32xf32>
    %3 = vector.multi_reduction <maximumf>, %2, %cst_4 [1] : vector<8x12x32xf32> to vector<8x32xf32>
    %c0_5 = arith.constant 0 : index
    %c0_6 = arith.constant 0 : index
    %4 = vector.load %arg3[%c0_5, %c0_6] : memref<1x32xf32, #tpu.memory_space<vmem>>, vector<1x32xf32>
    %5 = vector.broadcast %4 : vector<1x32xf32> to vector<8x32xf32>
    %6 = arith.addf %3, %5 : vector<8x32xf32>
    %c0_7 = arith.constant 0 : index
    %c0_8 = arith.constant 0 : index
    %7 = vector.load %arg4[%c0_7, %c0_8] : memref<8x32xf32, #tpu.memory_space<vmem>>, vector<8x32xf32>
    %c0_9 = arith.constant 0 : index
    %c0_10 = arith.constant 0 : index
    %8 = vector.load %arg5[%c0_9, %c0_10] : memref<32x32xf32, #tpu.memory_space<vmem>>, vector<32x32xf32>
    %cst_11 = arith.constant dense<0.000000e+00> : vector<8x32xf32>
    %9 = tpu.matmul %7, %8, %cst_11 {dimension_numbers = #tpu.dot_dimension_numbers<[1], [0], [0], [1], [0, 0, 1, 1], [], []>} : vector<8x32xf32>, vector<32x32xf32>, vector<8x32xf32> -> vector<8x32xf32>
    %10 = tpu.concatenate %9, %6 in 1 : vector<8x32xf32>, vector<8x32xf32> -> vector<8x64xf32>
    %c0_12 = arith.constant 0 : index
    %c0_13 = arith.constant 0 : index
    %11 = vector.load %arg6[%c0_12, %c0_13] : memref<64x64xf32, #tpu.memory_space<vmem>>, vector<64x64xf32>
    %c0_14 = arith.constant 0 : index
    %c0_15 = arith.constant 0 : index
    %12 = vector.load %arg7[%c0_14, %c0_15] : memref<1x64xf32, #tpu.memory_space<vmem>>, vector<1x64xf32>
    %c0_16 = arith.constant 0 : index
    %c0_17 = arith.constant 0 : index
    %13 = vector.load %arg8[%c0_16, %c0_17] : memref<64x64xf32, #tpu.memory_space<vmem>>, vector<64x64xf32>
    %c0_18 = arith.constant 0 : index
    %c0_19 = arith.constant 0 : index
    %14 = vector.load %arg9[%c0_18, %c0_19] : memref<1x64xf32, #tpu.memory_space<vmem>>, vector<1x64xf32>
    %cst_20 = arith.constant dense<0.000000e+00> : vector<8x64xf32>
    %15 = tpu.matmul %10, %11, %cst_20 {dimension_numbers = #tpu.dot_dimension_numbers<[1], [0], [0], [1], [0, 0, 1, 1], [], []>} : vector<8x64xf32>, vector<64x64xf32>, vector<8x64xf32> -> vector<8x64xf32>
    %16 = vector.broadcast %12 : vector<1x64xf32> to vector<8x64xf32>
    %17 = arith.addf %15, %16 : vector<8x64xf32>
    %cst_21 = arith.constant 0.000000e+00 : f32
    %18 = vector.broadcast %cst_21 : f32 to vector<8x64xf32>
    %19 = arith.maximumf %17, %18 : vector<8x64xf32>
    %cst_22 = arith.constant dense<0.000000e+00> : vector<8x64xf32>
    %20 = tpu.matmul %10, %13, %cst_22 {dimension_numbers = #tpu.dot_dimension_numbers<[1], [0], [0], [1], [0, 0, 1, 1], [], []>} : vector<8x64xf32>, vector<64x64xf32>, vector<8x64xf32> -> vector<8x64xf32>
    %21 = vector.broadcast %14 : vector<1x64xf32> to vector<8x64xf32>
    %22 = arith.addf %20, %21 : vector<8x64xf32>
    %23 = arith.negf %22 : vector<8x64xf32>
    %24 = math.exp %23 : vector<8x64xf32>
    %cst_23 = arith.constant 1.000000e+00 : f32
    %25 = vector.broadcast %cst_23 : f32 to vector<8x64xf32>
    %26 = arith.addf %25, %24 : vector<8x64xf32>
    %27 = arith.divf %25, %26 : vector<8x64xf32>
    %cst_24 = arith.constant 1.000000e+00 : f32
    %28 = vector.broadcast %cst_24 : f32 to vector<8x64xf32>
    %29 = arith.subf %28, %27 : vector<8x64xf32>
    %30 = arith.mulf %10, %29 : vector<8x64xf32>
    %31 = arith.mulf %27, %19 : vector<8x64xf32>
    %32 = arith.addf %30, %31 : vector<8x64xf32>
    %c0_25 = arith.constant 0 : index
    %c0_26 = arith.constant 0 : index
    %33 = vector.load %arg10[%c0_25, %c0_26] : memref<64x64xf32, #tpu.memory_space<vmem>>, vector<64x64xf32>
    %c0_27 = arith.constant 0 : index
    %c0_28 = arith.constant 0 : index
    %34 = vector.load %arg11[%c0_27, %c0_28] : memref<1x64xf32, #tpu.memory_space<vmem>>, vector<1x64xf32>
    %c0_29 = arith.constant 0 : index
    %c0_30 = arith.constant 0 : index
    %35 = vector.load %arg12[%c0_29, %c0_30] : memref<64x64xf32, #tpu.memory_space<vmem>>, vector<64x64xf32>
    %c0_31 = arith.constant 0 : index
    %c0_32 = arith.constant 0 : index
    %36 = vector.load %arg13[%c0_31, %c0_32] : memref<1x64xf32, #tpu.memory_space<vmem>>, vector<1x64xf32>
    %cst_33 = arith.constant dense<0.000000e+00> : vector<8x64xf32>
    %37 = tpu.matmul %32, %33, %cst_33 {dimension_numbers = #tpu.dot_dimension_numbers<[1], [0], [0], [1], [0, 0, 1, 1], [], []>} : vector<8x64xf32>, vector<64x64xf32>, vector<8x64xf32> -> vector<8x64xf32>
    %38 = vector.broadcast %34 : vector<1x64xf32> to vector<8x64xf32>
    %39 = arith.addf %37, %38 : vector<8x64xf32>
    %cst_34 = arith.constant 0.000000e+00 : f32
    %40 = vector.broadcast %cst_34 : f32 to vector<8x64xf32>
    %41 = arith.maximumf %39, %40 : vector<8x64xf32>
    %cst_35 = arith.constant dense<0.000000e+00> : vector<8x64xf32>
    %42 = tpu.matmul %32, %35, %cst_35 {dimension_numbers = #tpu.dot_dimension_numbers<[1], [0], [0], [1], [0, 0, 1, 1], [], []>} : vector<8x64xf32>, vector<64x64xf32>, vector<8x64xf32> -> vector<8x64xf32>
    %43 = vector.broadcast %36 : vector<1x64xf32> to vector<8x64xf32>
    %44 = arith.addf %42, %43 : vector<8x64xf32>
    %45 = arith.negf %44 : vector<8x64xf32>
    %46 = math.exp %45 : vector<8x64xf32>
    %cst_36 = arith.constant 1.000000e+00 : f32
    %47 = vector.broadcast %cst_36 : f32 to vector<8x64xf32>
    %48 = arith.addf %47, %46 : vector<8x64xf32>
    %49 = arith.divf %47, %48 : vector<8x64xf32>
    %cst_37 = arith.constant 1.000000e+00 : f32
    %50 = vector.broadcast %cst_37 : f32 to vector<8x64xf32>
    %51 = arith.subf %50, %49 : vector<8x64xf32>
    %52 = arith.mulf %32, %51 : vector<8x64xf32>
    %53 = arith.mulf %49, %41 : vector<8x64xf32>
    %54 = arith.addf %52, %53 : vector<8x64xf32>
    %c0_38 = arith.constant 0 : index
    %c0_39 = arith.constant 0 : index
    %55 = vector.load %arg14[%c0_38, %c0_39] : memref<8x64xf32, #tpu.memory_space<vmem>>, vector<8x64xf32>
    tpu.vector_store %arg14[%c0_38, %c0_39], %54 {strides = array<i32>} : memref<8x64xf32, #tpu.memory_space<vmem>>, vector<8x64xf32>,
    return
  }
  func.func @transform_0(%arg0: i32) -> (i32, i32, i32) {
    %c0_i32 = arith.constant 0 : i32
    %c0_i32_0 = arith.constant 0 : i32
    %c0_i32_1 = arith.constant 0 : i32
    return %arg0, %c0_i32, %c0_i32_0 : i32, i32, i32
  }
  func.func @transform_1(%arg0: i32) -> (i32, i32) {
    %c0_i32 = arith.constant 0 : i32
    %c0_i32_0 = arith.constant 0 : i32
    %c0_i32_1 = arith.constant 0 : i32
    return %c0_i32, %c0_i32_0 : i32, i32
  }
  func.func @transform_2(%arg0: i32) -> (i32, i32) {
    %c0_i32 = arith.constant 0 : i32
    %c0_i32_0 = arith.constant 0 : i32
    %c0_i32_1 = arith.constant 0 : i32
    return %c0_i32, %c0_i32_0 : i32, i32
  }
  func.func @transform_3(%arg0: i32) -> (i32, i32) {
    %c0_i32 = arith.constant 0 : i32
    %c0_i32_0 = arith.constant 0 : i32
    return %arg0, %c0_i32 : i32, i32
  }
  func.func @transform_4(%arg0: i32) -> (i32, i32) {
    %c0_i32 = arith.constant 0 : i32
    %c0_i32_0 = arith.constant 0 : i32
    %c0_i32_1 = arith.constant 0 : i32
    return %c0_i32, %c0_i32_0 : i32, i32
  }
  func.func @transform_5(%arg0: i32) -> (i32, i32) {
    %c0_i32 = arith.constant 0 : i32
    %c0_i32_0 = arith.constant 0 : i32
    %c0_i32_1 = arith.constant 0 : i32
    return %c0_i32, %c0_i32_0 : i32, i32
  }
  func.func @transform_6(%arg0: i32) -> (i32, i32) {
    %c0_i32 = arith.constant 0 : i32
    %c0_i32_0 = arith.constant 0 : i32
    %c0_i32_1 = arith.constant 0 : i32
    return %c0_i32, %c0_i32_0 : i32, i32
  }
  func.func @transform_7(%arg0: i32) -> (i32, i32) {
    %c0_i32 = arith.constant 0 : i32
    %c0_i32_0 = arith.constant 0 : i32
    %c0_i32_1 = arith.constant 0 : i32
    return %c0_i32, %c0_i32_0 : i32, i32
  }
  func.func @transform_8(%arg0: i32) -> (i32, i32) {
    %c0_i32 = arith.constant 0 : i32
    %c0_i32_0 = arith.constant 0 : i32
    %c0_i32_1 = arith.constant 0 : i32
    return %c0_i32, %c0_i32_0 : i32, i32
  }
  func.func @transform_9(%arg0: i32) -> (i32, i32) {
    %c0_i32 = arith.constant 0 : i32
    %c0_i32_0 = arith.constant 0 : i32
    %c0_i32_1 = arith.constant 0 : i32
    return %c0_i32, %c0_i32_0 : i32, i32
  }
  func.func @transform_10(%arg0: i32) -> (i32, i32) {
    %c0_i32 = arith.constant 0 : i32
    %c0_i32_0 = arith.constant 0 : i32
    %c0_i32_1 = arith.constant 0 : i32
    return %c0_i32, %c0_i32_0 : i32, i32
  }
  func.func @transform_11(%arg0: i32) -> (i32, i32) {
    %c0_i32 = arith.constant 0 : i32
    %c0_i32_0 = arith.constant 0 : i32
    %c0_i32_1 = arith.constant 0 : i32
    return %c0_i32, %c0_i32_0 : i32, i32
  }
  func.func @transform_12(%arg0: i32) -> (i32, i32) {
    %c0_i32 = arith.constant 0 : i32
    %c0_i32_0 = arith.constant 0 : i32
    %c0_i32_1 = arith.constant 0 : i32
    return %c0_i32, %c0_i32_0 : i32, i32
  }
  func.func @transform_13(%arg0: i32) -> (i32, i32) {
    %c0_i32 = arith.constant 0 : i32
    %c0_i32_0 = arith.constant 0 : i32
    return %arg0, %c0_i32 : i32, i32
  }
}

</mosaic_0001>

<llo_original>
// kernel: embedding_forward.1
$region0: #{embedding_forward.1}
  #allocation0 [shape = 'u32[]', space=smem, size = 0x4, offset = 0x4, fixed_abs, tag = 'smem constant byte address 0x4 - core index']
  #allocation1 [shape = 'u32[144,128]{1,0:T(1,128)}', space=vmem, size = 0x12000, scoped, tag = 'internal scratch']
  %s0 = inlined_call_operand.vmem [shape: bf16[16,12,128], index: 0, kind: input, shape index: {}]
  %s1 = inlined_call_operand.vmem [shape: bf16[128,32], index: 1, kind: input, shape index: {}]
  %s2 = inlined_call_operand.vmem [shape: f32[1,32], index: 2, kind: input, shape index: {}]
  %s3 = inlined_call_operand.vmem [shape: f32[16,32], index: 3, kind: input, shape index: {}]
  %s4 = inlined_call_operand.vmem [shape: f32[32,32], index: 4, kind: input, shape index: {}]
  %s5 = inlined_call_operand.vmem [shape: f32[64,64], index: 5, kind: input, shape index: {}]
  %s6 = inlined_call_operand.vmem [shape: f32[1,64], index: 6, kind: input, shape index: {}]
  %s7 = inlined_call_operand.vmem [shape: f32[64,64], index: 7, kind: input, shape index: {}]
  %s8 = inlined_call_operand.vmem [shape: f32[1,64], index: 8, kind: input, shape index: {}]
  %s9 = inlined_call_operand.vmem [shape: f32[64,64], index: 9, kind: input, shape index: {}]
  %s10 = inlined_call_operand.vmem [shape: f32[1,64], index: 10, kind: input, shape index: {}]
  %s11 = inlined_call_operand.vmem [shape: f32[64,64], index: 11, kind: input, shape index: {}]
  %s12 = inlined_call_operand.vmem [shape: f32[1,64], index: 12, kind: input, shape index: {}]
  %s13 = inlined_call_operand.hbm [shape: f32[16,64], index: 13, kind: output, shape index: {}]
  %s14 = sld [smem:[#allocation0]]
  $region85: #{embedding_forward.1} parent=0
    _
  %s16 = ssub.s32 1, %s14
  %s17 = scalar_select 0, %s16, %s14
  $region1: #{embedding_forward.1} parent=0
    #allocation2 [shape = 'u8[8192]{0}', space=vmem, size = 0x2000, scoped, tag = 'output window, operand 0']
    #allocation3 [shape = 's32[2]{0}', space=sflag, size = 0x8, scoped, tag = 'scoped memory for embedding_forward.1']
    %18 = vsyncpa [#allocation3], 0
    %s19 = scalar_lea.sflag [#allocation3], 1
    %20 = vsyncpa %s19, 0
    loop: start=0, step=1, limit=4
    $region2: #{embedding_forward.1} parent=1 // loop_pre_header
      _
    $region3: #{embedding_forward.1} parent=1 // loop_header
      %s22 = sphi 0, %s26
      %p23 = scmp.ge.s32.totalorder %s22, 4
      %s32 = sphi 0, %s34
      %s35 = sphi 0, %s32
      %s36 = sphi 0, %s35
      %s52 = sphi 0, %s36
      %s56 = sphi 0, %s56
      %s58 = sphi 0, %s56
      %s59 = sphi 0, %s58
      %s73 = sphi 0, %s59
      %s77 = sphi 0, %s77
      %s79 = sphi 0, %s77
      %s80 = sphi 0, %s79
      %s94 = sphi 0, %s80
      %s100 = sphi 0, %s102
      %s103 = sphi 0, %s100
      %s104 = sphi 0, %s103
      %s120 = sphi 0, %s104
      %s124 = sphi 0, %s124
      %s126 = sphi 0, %s124
      %s127 = sphi 0, %s126
      %s141 = sphi 0, %s127
      %s145 = sphi 0, %s145
      %s147 = sphi 0, %s145
      %s148 = sphi 0, %s147
      %s162 = sphi 0, %s148
      %s166 = sphi 0, %s166
      %s168 = sphi 0, %s166
      %s169 = sphi 0, %s168
      %s183 = sphi 0, %s169
      %s187 = sphi 0, %s187
      %s189 = sphi 0, %s187
      %s190 = sphi 0, %s189
      %s204 = sphi 0, %s190
      %s208 = sphi 0, %s208
      %s210 = sphi 0, %s208
      %s211 = sphi 0, %s210
      %s225 = sphi 0, %s211
      %s229 = sphi 0, %s229
      %s231 = sphi 0, %s229
      %s232 = sphi 0, %s231
      %s246 = sphi 0, %s232
      %s250 = sphi 0, %s250
      %s252 = sphi 0, %s250
      %s253 = sphi 0, %s252
      %s267 = sphi 0, %s253
      %s271 = sphi 0, %s271
      %s273 = sphi 0, %s271
      %s274 = sphi 0, %s273
      %s288 = sphi 0, %s274
      %s292 = sphi 0, %s292
      %s294 = sphi 0, %s292
      %s295 = sphi 0, %s294
      %s309 = sphi 0, %s295
      %s315 = sphi 0, %s317
      %s318 = sphi 0, %s315
      %s319 = sphi 0, %s318
      %s335 = sphi 0, %s319
    $region4: #{embedding_forward.1} parent=1 // loop_header_branch
      %25 = sbr.rel (%p23) target = $region8
    $region5: #{embedding_forward.1} parent=1 // loop_body
      %s27 = ssub.s32 %s22, 1
      %s28 = ssub.s32 %s22, 2
      %s29 = sadd.s32 %s22, 1
      %s30 = ssub.s32 %s22, %s29
      %p31 = scmp.eq.s32.totalorder %s30, 0
      %s33 = sadd.s32 %s32, 1
      %s34 = scalar_select %p31, %s32, %s33
      %p37 = pneg %p31
      %p38 = scmp.eq.s32.totalorder %s22, 1
      %p39 = por %p37, %p38
      %p40 = scmp.ne.s32.totalorder %s32, %s35
      %p41 = scmp.eq.s32.totalorder %s22, 0
      %p42 = por %p40, %p41
      %p43 = scmp.ne.s32.totalorder %s32, %s35
      %p44 = scmp.eq.s32.totalorder %s27, 1
      %p45 = por %p43, %p44
      %p46 = scmp.ne.s32.totalorder %s35, %s36
      %p47 = scmp.eq.s32.totalorder %s27, 0
      %p48 = por %p46, %p47
      %p49 = scmp.ne.s32.totalorder %s35, %s36
      %p50 = scmp.eq.s32.totalorder %s28, 1
      %p51 = por %p49, %p50
      %p53 = scmp.ne.s32.totalorder %s36, %s52
      %p54 = scmp.eq.s32.totalorder %s28, 0
      %p55 = por %p53, %p54
      %s57 = sadd.s32 %s56, 1
      %p60 = scmp.eq.s32.totalorder %s22, 1
      %p61 = scmp.ne.s32.totalorder %s56, %s58
      %p62 = scmp.eq.s32.totalorder %s22, 0
      %p63 = por %p61, %p62
      %p64 = scmp.ne.s32.totalorder %s56, %s58
      %p65 = scmp.eq.s32.totalorder %s27, 1
      %p66 = por %p64, %p65
      %p67 = scmp.ne.s32.totalorder %s58, %s59
      %p68 = scmp.eq.s32.totalorder %s27, 0
      %p69 = por %p67, %p68
      %p70 = scmp.ne.s32.totalorder %s58, %s59
      %p71 = scmp.eq.s32.totalorder %s28, 1
      %p72 = por %p70, %p71
      %p74 = scmp.ne.s32.totalorder %s59, %s73
      %p75 = scmp.eq.s32.totalorder %s28, 0
      %p76 = por %p74, %p75
      %s78 = sadd.s32 %s77, 1
      %p81 = scmp.eq.s32.totalorder %s22, 1
      %p82 = scmp.ne.s32.totalorder %s77, %s79
      %p83 = scmp.eq.s32.totalorder %s22, 0
      %p84 = por %p82, %p83
      %p85 = scmp.ne.s32.totalorder %s77, %s79
      %p86 = scmp.eq.s32.totalorder %s27, 1
      %p87 = por %p85, %p86
      %p88 = scmp.ne.s32.totalorder %s79, %s80
      %p89 = scmp.eq.s32.totalorder %s27, 0
      %p90 = por %p88, %p89
      %p91 = scmp.ne.s32.totalorder %s79, %s80
      %p92 = scmp.eq.s32.totalorder %s28, 1
      %p93 = por %p91, %p92
      %p95 = scmp.ne.s32.totalorder %s80, %s94
      %p96 = scmp.eq.s32.totalorder %s28, 0
      %p97 = por %p95, %p96
      %s98 = ssub.s32 %s22, %s29
      %p99 = scmp.eq.s32.totalorder %s98, 0
      %s101 = sadd.s32 %s100, 1
      %s102 = scalar_select %p99, %s100, %s101
      %p105 = pneg %p99
      %p106 = scmp.eq.s32.totalorder %s22, 1
      %p107 = por %p105, %p106
      %p108 = scmp.ne.s32.totalorder %s100, %s103
      %p109 = scmp.eq.s32.totalorder %s22, 0
      %p110 = por %p108, %p109
      %p111 = scmp.ne.s32.totalorder %s100, %s103
      %p112 = scmp.eq.s32.totalorder %s27, 1
      %p113 = por %p111, %p112
      %p114 = scmp.ne.s32.totalorder %s103, %s104
      %p115 = scmp.eq.s32.totalorder %s27, 0
      %p116 = por %p114, %p115
      %p117 = scmp.ne.s32.totalorder %s103, %s104
      %p118 = scmp.eq.s32.totalorder %s28, 1
      %p119 = por %p117, %p118
      %p121 = scmp.ne.s32.totalorder %s104, %s120
      %p122 = scmp.eq.s32.totalorder %s28, 0
      %p123 = por %p121, %p122
      %s125 = sadd.s32 %s124, 1
      %p128 = scmp.eq.s32.totalorder %s22, 1
      %p129 = scmp.ne.s32.totalorder %s124, %s126
      %p130 = scmp.eq.s32.totalorder %s22, 0
      %p131 = por %p129, %p130
      %p132 = scmp.ne.s32.totalorder %s124, %s126
      %p133 = scmp.eq.s32.totalorder %s27, 1
      %p134 = por %p132, %p133
      %p135 = scmp.ne.s32.totalorder %s126, %s127
      %p136 = scmp.eq.s32.totalorder %s27, 0
      %p137 = por %p135, %p136
      %p138 = scmp.ne.s32.totalorder %s126, %s127
      %p139 = scmp.eq.s32.totalorder %s28, 1
      %p140 = por %p138, %p139
      %p142 = scmp.ne.s32.totalorder %s127, %s141
      %p143 = scmp.eq.s32.totalorder %s28, 0
      %p144 = por %p142, %p143
      %s146 = sadd.s32 %s145, 1
      %p149 = scmp.eq.s32.totalorder %s22, 1
      %p150 = scmp.ne.s32.totalorder %s145, %s147
      %p151 = scmp.eq.s32.totalorder %s22, 0
      %p152 = por %p150, %p151
      %p153 = scmp.ne.s32.totalorder %s145, %s147
      %p154 = scmp.eq.s32.totalorder %s27, 1
      %p155 = por %p153, %p154
      %p156 = scmp.ne.s32.totalorder %s147, %s148
      %p157 = scmp.eq.s32.totalorder %s27, 0
      %p158 = por %p156, %p157
      %p159 = scmp.ne.s32.totalorder %s147, %s148
      %p160 = scmp.eq.s32.totalorder %s28, 1
      %p161 = por %p159, %p160
      %p163 = scmp.ne.s32.totalorder %s148, %s162
      %p164 = scmp.eq.s32.totalorder %s28, 0
      %p165 = por %p163, %p164
      %s167 = sadd.s32 %s166, 1
      %p170 = scmp.eq.s32.totalorder %s22, 1
      %p171 = scmp.ne.s32.totalorder %s166, %s168
      %p172 = scmp.eq.s32.totalorder %s22, 0
      %p173 = por %p171, %p172
      %p174 = scmp.ne.s32.totalorder %s166, %s168
      %p175 = scmp.eq.s32.totalorder %s27, 1
      %p176 = por %p174, %p175
      %p177 = scmp.ne.s32.totalorder %s168, %s169
      %p178 = scmp.eq.s32.totalorder %s27, 0
      %p179 = por %p177, %p178
      %p180 = scmp.ne.s32.totalorder %s168, %s169
      %p181 = scmp.eq.s32.totalorder %s28, 1
      %p182 = por %p180, %p181
      %p184 = scmp.ne.s32.totalorder %s169, %s183
      %p185 = scmp.eq.s32.totalorder %s28, 0
      %p186 = por %p184, %p185
      %s188 = sadd.s32 %s187, 1
      %p191 = scmp.eq.s32.totalorder %s22, 1
      %p192 = scmp.ne.s32.totalorder %s187, %s189
      %p193 = scmp.eq.s32.totalorder %s22, 0
      %p194 = por %p192, %p193
      %p195 = scmp.ne.s32.totalorder %s187, %s189
      %p196 = scmp.eq.s32.totalorder %s27, 1
      %p197 = por %p195, %p196
      %p198 = scmp.ne.s32.totalorder %s189, %s190
      %p199 = scmp.eq.s32.totalorder %s27, 0
      %p200 = por %p198, %p199
      %p201 = scmp.ne.s32.totalorder %s189, %s190
      %p202 = scmp.eq.s32.totalorder %s28, 1
      %p203 = por %p201, %p202
      %p205 = scmp.ne.s32.totalorder %s190, %s204
      %p206 = scmp.eq.s32.totalorder %s28, 0
      %p207 = por %p205, %p206
      %s209 = sadd.s32 %s208, 1
      %p212 = scmp.eq.s32.totalorder %s22, 1
      %p213 = scmp.ne.s32.totalorder %s208, %s210
      %p214 = scmp.eq.s32.totalorder %s22, 0
      %p215 = por %p213, %p214
      %p216 = scmp.ne.s32.totalorder %s208, %s210
      %p217 = scmp.eq.s32.totalorder %s27, 1
      %p218 = por %p216, %p217
      %p219 = scmp.ne.s32.totalorder %s210, %s211
      %p220 = scmp.eq.s32.totalorder %s27, 0
      %p221 = por %p219, %p220
      %p222 = scmp.ne.s32.totalorder %s210, %s211
      %p223 = scmp.eq.s32.totalorder %s28, 1
      %p224 = por %p222, %p223
      %p226 = scmp.ne.s32.totalorder %s211, %s225
      %p227 = scmp.eq.s32.totalorder %s28, 0
      %p228 = por %p226, %p227
      %s230 = sadd.s32 %s229, 1
      %p233 = scmp.eq.s32.totalorder %s22, 1
      %p234 = scmp.ne.s32.totalorder %s229, %s231
      %p235 = scmp.eq.s32.totalorder %s22, 0
      %p236 = por %p234, %p235
      %p237 = scmp.ne.s32.totalorder %s229, %s231
      %p238 = scmp.eq.s32.totalorder %s27, 1
      %p239 = por %p237, %p238
      %p240 = scmp.ne.s32.totalorder %s231, %s232
      %p241 = scmp.eq.s32.totalorder %s27, 0
      %p242 = por %p240, %p241
      %p243 = scmp.ne.s32.totalorder %s231, %s232
      %p244 = scmp.eq.s32.totalorder %s28, 1
      %p245 = por %p243, %p244
      %p247 = scmp.ne.s32.totalorder %s232, %s246
      %p248 = scmp.eq.s32.totalorder %s28, 0
      %p249 = por %p247, %p248
      %s251 = sadd.s32 %s250, 1
      %p254 = scmp.eq.s32.totalorder %s22, 1
      %p255 = scmp.ne.s32.totalorder %s250, %s252
      %p256 = scmp.eq.s32.totalorder %s22, 0
      %p257 = por %p255, %p256
      %p258 = scmp.ne.s32.totalorder %s250, %s252
      %p259 = scmp.eq.s32.totalorder %s27, 1
      %p260 = por %p258, %p259
      %p261 = scmp.ne.s32.totalorder %s252, %s253
      %p262 = scmp.eq.s32.totalorder %s27, 0
      %p263 = por %p261, %p262
      %p264 = scmp.ne.s32.totalorder %s252, %s253
      %p265 = scmp.eq.s32.totalorder %s28, 1
      %p266 = por %p264, %p265
      %p268 = scmp.ne.s32.totalorder %s253, %s267
      %p269 = scmp.eq.s32.totalorder %s28, 0
      %p270 = por %p268, %p269
      %s272 = sadd.s32 %s271, 1
      %p275 = scmp.eq.s32.totalorder %s22, 1
      %p276 = scmp.ne.s32.totalorder %s271, %s273
      %p277 = scmp.eq.s32.totalorder %s22, 0
      %p278 = por %p276, %p277
      %p279 = scmp.ne.s32.totalorder %s271, %s273
      %p280 = scmp.eq.s32.totalorder %s27, 1
      %p281 = por %p279, %p280
      %p282 = scmp.ne.s32.totalorder %s273, %s274
      %p283 = scmp.eq.s32.totalorder %s27, 0
      %p284 = por %p282, %p283
      %p285 = scmp.ne.s32.totalorder %s273, %s274
      %p286 = scmp.eq.s32.totalorder %s28, 1
      %p287 = por %p285, %p286
      %p289 = scmp.ne.s32.totalorder %s274, %s288
      %p290 = scmp.eq.s32.totalorder %s28, 0
      %p291 = por %p289, %p290
      %s293 = sadd.s32 %s292, 1
      %p296 = scmp.eq.s32.totalorder %s22, 1
      %p297 = scmp.ne.s32.totalorder %s292, %s294
      %p298 = scmp.eq.s32.totalorder %s22, 0
      %p299 = por %p297, %p298
      %p300 = scmp.ne.s32.totalorder %s292, %s294
      %p301 = scmp.eq.s32.totalorder %s27, 1
      %p302 = por %p300, %p301
      %p303 = scmp.ne.s32.totalorder %s294, %s295
      %p304 = scmp.eq.s32.totalorder %s27, 0
      %p305 = por %p303, %p304
      %p306 = scmp.ne.s32.totalorder %s294, %s295
      %p307 = scmp.eq.s32.totalorder %s28, 1
      %p308 = por %p306, %p307
      %p310 = scmp.ne.s32.totalorder %s295, %s309
      %p311 = scmp.eq.s32.totalorder %s28, 0
      %p312 = por %p310, %p311
      %s313 = ssub.s32 %s22, %s29
      %p314 = scmp.eq.s32.totalorder %s313, 0
      %s316 = sadd.s32 %s315, 1
      %s317 = scalar_select %p314, %s315, %s316
      %p320 = pneg %p314
      %p321 = scmp.eq.s32.totalorder %s22, 1
      %p322 = por %p320, %p321
      %p323 = scmp.ne.s32.totalorder %s315, %s318
      %p324 = scmp.eq.s32.totalorder %s22, 0
      %p325 = por %p323, %p324
      %p326 = scmp.ne.s32.totalorder %s315, %s318
      %p327 = scmp.eq.s32.totalorder %s27, 1
      %p328 = por %p326, %p327
      %p329 = scmp.ne.s32.totalorder %s318, %s319
      %p330 = scmp.eq.s32.totalorder %s27, 0
      %p331 = por %p329, %p330
      %p332 = scmp.ne.s32.totalorder %s318, %s319
      %p333 = scmp.eq.s32.totalorder %s28, 1
      %p334 = por %p332, %p333
      %p336 = scmp.ne.s32.totalorder %s319, %s335
      %p337 = scmp.eq.s32.totalorder %s28, 0
      %p338 = por %p336, %p337
      %p339 = scmp.le.s32.totalorder 1, %s22
      %p340 = scmp.lt.s32.totalorder %s22, 3
      %p341 = pnand %p339, %p340
      %p342 = pneg %p341
      // Predicated region
      $region9: #{embedding_forward.1} parent=5 // pred_check
        _
      $region10: #{embedding_forward.1} parent=5 // pred_check_branch
        %344 = sbr.rel (%p341) target = $region12
      $region11: #{embedding_forward.1} parent=5 // pred_region
        %s345 = ssub.s32 %s22, 1
        // Predicated region
        $region13: #{embedding_forward.1} parent=11 // pred_check
          %p346 = pneg %p69
        $region14: #{embedding_forward.1} parent=11 // pred_check_branch
          %348 = sbr.rel (%p346) target = $region16
        $region15: #{embedding_forward.1} parent=11 // pred_region
          _
        $region16: #{embedding_forward.1} parent=11 // pred_fallthru
          _
        // Predicated region
        $region17: #{embedding_forward.1} parent=11 // pred_check
          %p349 = pneg %p90
        $region18: #{embedding_forward.1} parent=11 // pred_check_branch
          %351 = sbr.rel (%p349) target = $region20
        $region19: #{embedding_forward.1} parent=11 // pred_region
          _
        $region20: #{embedding_forward.1} parent=11 // pred_fallthru
          _
        // Predicated region
        $region21: #{embedding_forward.1} parent=11 // pred_check
          %p352 = pneg %p137
        $region22: #{embedding_forward.1} parent=11 // pred_check_branch
          %354 = sbr.rel (%p352) target = $region24
        $region23: #{embedding_forward.1} parent=11 // pred_region
          _
        $region24: #{embedding_forward.1} parent=11 // pred_fallthru
          _
        // Predicated region
        $region25: #{embedding_forward.1} parent=11 // pred_check
          %p355 = pneg %p158
        $region26: #{embedding_forward.1} parent=11 // pred_check_branch
          %357 = sbr.rel (%p355) target = $region28
        $region27: #{embedding_forward.1} parent=11 // pred_region
          _
        $region28: #{embedding_forward.1} parent=11 // pred_fallthru
          _
        // Predicated region
        $region29: #{embedding_forward.1} parent=11 // pred_check
          %p358 = pneg %p179
        $region30: #{embedding_forward.1} parent=11 // pred_check_branch
          %360 = sbr.rel (%p358) target = $region32
        $region31: #{embedding_forward.1} parent=11 // pred_region
          _
        $region32: #{embedding_forward.1} parent=11 // pred_fallthru
          _
        // Predicated region
        $region33: #{embedding_forward.1} parent=11 // pred_check
          %p361 = pneg %p200
        $region34: #{embedding_forward.1} parent=11 // pred_check_branch
          %363 = sbr.rel (%p361) target = $region36
        $region35: #{embedding_forward.1} parent=11 // pred_region
          _
        $region36: #{embedding_forward.1} parent=11 // pred_fallthru
          _
        // Predicated region
        $region37: #{embedding_forward.1} parent=11 // pred_check
          %p364 = pneg %p221
        $region38: #{embedding_forward.1} parent=11 // pred_check_branch
          %366 = sbr.rel (%p364) target = $region40
        $region39: #{embedding_forward.1} parent=11 // pred_region
          _
        $region40: #{embedding_forward.1} parent=11 // pred_fallthru
          _
        // Predicated region
        $region41: #{embedding_forward.1} parent=11 // pred_check
          %p367 = pneg %p242
        $region42: #{embedding_forward.1} parent=11 // pred_check_branch
          %369 = sbr.rel (%p367) target = $region44
        $region43: #{embedding_forward.1} parent=11 // pred_region
          _
        $region44: #{embedding_forward.1} parent=11 // pred_fallthru
          _
        // Predicated region
        $region45: #{embedding_forward.1} parent=11 // pred_check
          %p370 = pneg %p263
        $region46: #{embedding_forward.1} parent=11 // pred_check_branch
          %372 = sbr.rel (%p370) target = $region48
        $region47: #{embedding_forward.1} parent=11 // pred_region
          _
        $region48: #{embedding_forward.1} parent=11 // pred_fallthru
          _
        // Predicated region
        $region49: #{embedding_forward.1} parent=11 // pred_check
          %p373 = pneg %p284
        $region50: #{embedding_forward.1} parent=11 // pred_check_branch
          %375 = sbr.rel (%p373) target = $region52
        $region51: #{embedding_forward.1} parent=11 // pred_region
          _
        $region52: #{embedding_forward.1} parent=11 // pred_fallthru
          _
        // Predicated region
        $region53: #{embedding_forward.1} parent=11 // pred_check
          %p376 = pneg %p305
        $region54: #{embedding_forward.1} parent=11 // pred_check_branch
          %378 = sbr.rel (%p376) target = $region56
        $region55: #{embedding_forward.1} parent=11 // pred_region
          _
        $region56: #{embedding_forward.1} parent=11 // pred_fallthru
          _
      $region12: #{embedding_forward.1} parent=5 // pred_fallthru
        _
      %p379 = scmp.lt.s32.totalorder %s22, 2
      // Predicated region
      $region57: #{embedding_forward.1} parent=5 // pred_check
        %p380 = pneg %p379
      $region58: #{embedding_forward.1} parent=5 // pred_check_branch
        %382 = sbr.rel (%p380) target = $region60
      $region59: #{embedding_forward.1} parent=5 // pred_region
        // Predicated region
        $region61: #{embedding_forward.1} parent=59 // pred_check
          %p383 = pneg %p42
        $region62: #{embedding_forward.1} parent=59 // pred_check_branch
          %385 = sbr.rel (%p383) target = $region64
        $region63: #{embedding_forward.1} parent=59 // pred_region
          %s386 = smul.u32 8, %s22
          %p387 = scmp.lt.s32.totalorder %s386, 15
          %s388 = scalar_select %p387, %s386, 15
          %s389 = smul.addr %s388, 2
          %s390 = smul.addr %s389, 4
          %s391 = scalar_lea.vmem %s0, %s390
          %s392 = smul.u32 8, %s22
        $region64: #{embedding_forward.1} parent=59 // pred_fallthru
          _
        // Predicated region
        $region65: #{embedding_forward.1} parent=59 // pred_check
          %p393 = pneg %p110
        $region66: #{embedding_forward.1} parent=59 // pred_check_branch
          %395 = sbr.rel (%p393) target = $region68
        $region67: #{embedding_forward.1} parent=59 // pred_region
          %p396 = scmp.lt.s32.totalorder %s22, 1
          %s397 = scalar_select %p396, %s22, 1
          %s398 = smul.addr %s397, 8
          %s399 = scalar_lea.vmem %s3, %s398
        $region68: #{embedding_forward.1} parent=59 // pred_fallthru
          _
      $region60: #{embedding_forward.1} parent=5 // pred_fallthru
        _
      %p400 = scmp.le.s32.totalorder 1, %s22
      %p401 = scmp.lt.s32.totalorder %s22, 3
      %p402 = pnand %p400, %p401
      %p403 = pneg %p402
      // Predicated region
      $region69: #{embedding_forward.1} parent=5 // pred_check
        _
      $region70: #{embedding_forward.1} parent=5 // pred_check_branch
        %405 = sbr.rel (%p402) target = $region72
      $region71: #{embedding_forward.1} parent=5 // pred_region
        %s406 = ssub.s32 %s22, 1
        %s407 = smul.u32 8, %s27
        %p408 = scmp.lt.s32.totalorder %s407, 15
        %s409 = scalar_select %p408, %s407, 15
        %s410 = smul.addr %s409, 2
        %s411 = smul.addr %s410, 4
        %s412 = scalar_lea.vmem %s0, %s411
        %p413 = pneg %p48
        %p414 = pneg %p45
        %p415 = pneg %p69
        %p416 = pneg %p66
        %p417 = pneg %p90
        %p418 = pneg %p87
        %p419 = scmp.lt.s32.totalorder %s27, 1
        %s420 = scalar_select %p419, %s27, 1
        %s421 = smul.addr %s420, 8
        %s422 = scalar_lea.vmem %s3, %s421
        %p423 = pneg %p116
        %p424 = pneg %p113
        %p425 = pneg %p137
        %p426 = pneg %p134
        %p427 = pneg %p158
        %p428 = pneg %p155
        %p429 = pneg %p179
        %p430 = pneg %p176
        %p431 = pneg %p200
        %p432 = pneg %p197
        %p433 = pneg %p221
        %p434 = pneg %p218
        %p435 = pneg %p242
        %p436 = pneg %p239
        %p437 = pneg %p263
        %p438 = pneg %p260
        %p439 = pneg %p284
        %p440 = pneg %p281
        %p441 = pneg %p305
        %p442 = pneg %p302
        %p443 = pneg %p331
        %p444 = pneg %p328
        %s445 = sand.u32 %s318, 1
        %s446 = scalar_lea.sflag [#allocation3], %s445
        %s447 = sand.u32 %s318, 1
        %s448 = smul.addr %s447, 8
        %s449 = scalar_lea.vmem [#allocation2], %s448
        %s450 = smul.u32 8, %s27
        %p451 = scmp.lt.s32.totalorder %s450, 15
        %s452 = scalar_select %p451, %s450, 15
        %s453 = smul.addr %s452, 2
        %s454 = smul.addr %s453, 4
        %s455 = scalar_lea.vmem %s0, %s454
        %s456 = smul.u32 8, %s27
        %p457 = scmp.lt.s32.totalorder %s27, 1
        %s458 = scalar_select %p457, %s27, 1
        %s459 = smul.addr %s458, 8
        %s460 = scalar_lea.vmem %s3, %s459
        %v462 = vld [vmem:[%s455] sm:$0xf]
        %v463 = vld [vmem:[%s455 + $0x4] sm:$0x3]
        %v464 = vld [vmem:[%s455 + $0x8] sm:$0xf]
        %v465 = vld [vmem:[%s455 + $0xc] sm:$0x3]
        %v466 = vld [vmem:[%s455 + $0x10] sm:$0xf]
        %v467 = vld [vmem:[%s455 + $0x14] sm:$0x3]
        %v468 = vld [vmem:[%s455 + $0x18] sm:$0xf]
        %v469 = vld [vmem:[%s455 + $0x1c] sm:$0x3]
        %v470 = vld [vmem:[%s455 + $0x20] sm:$0xf]
        %v471 = vld [vmem:[%s455 + $0x24] sm:$0x3]
        %v472 = vld [vmem:[%s455 + $0x28] sm:$0xf]
        %v473 = vld [vmem:[%s455 + $0x2c] sm:$0x3]
        %v474 = vld [vmem:[%s455 + $0x30] sm:$0xf]
        %v475 = vld [vmem:[%s455 + $0x34] sm:$0x3]
        %v476 = vld [vmem:[%s455 + $0x38] sm:$0xf]
        %v477 = vld [vmem:[%s455 + $0x3c] sm:$0x3]
        %v478 = vld [vmem:[%s1] sm:$0xf]
        %v479 = vld [vmem:[%s1 + $0x4] sm:$0xf]
        %v480 = vld [vmem:[%s1 + $0x8] sm:$0xf]
        %v481 = vld [vmem:[%s1 + $0xc] sm:$0xf]
        %v482 = vld [vmem:[%s1 + $0x10] sm:$0xf]
        %v483 = vld [vmem:[%s1 + $0x14] sm:$0xf]
        %v484 = vld [vmem:[%s1 + $0x18] sm:$0xf]
        %v485 = vld [vmem:[%s1 + $0x1c] sm:$0xf]
        %v486 = vld [vmem:[%s1 + $0x20] sm:$0xf]
        %v487 = vld [vmem:[%s1 + $0x24] sm:$0xf]
        %v488 = vld [vmem:[%s1 + $0x28] sm:$0xf]
        %v489 = vld [vmem:[%s1 + $0x2c] sm:$0xf]
        %v490 = vld [vmem:[%s1 + $0x30] sm:$0xf]
        %v491 = vld [vmem:[%s1 + $0x34] sm:$0xf]
        %v492 = vld [vmem:[%s1 + $0x38] sm:$0xf]
        %v493 = vld [vmem:[%s1 + $0x3c] sm:$0xf]
        %v511 = vunpack.c.l.s4 1983009808
        %v512 = vunpack.c.0.s8 %v511
        %v513 = vlaneseq
        %v514 = vshrl.u32 %v513, 7
        %v515 = vsub.s32 %v512, %v514
        %v516 = vrot.slane %v462, %v515
        %v517 = vcombine.high %v516, %v516
        %v519 = vunpack.c.l.s4 1983009808
        %v520 = vunpack.c.0.s8 %v519
        %v521 = vlaneseq
        %v522 = vshrl.u32 %v521, 7
        %v523 = vsub.s32 %v520, %v522
        %v524 = vrot.slane %v463, %v523
        %v526 = vunpack.c.l.s4 1983009808
        %v527 = vunpack.c.0.s8 %v526
        %v528 = vlaneseq
        %v529 = vshrl.u32 %v528, 7
        %v530 = vsub.s32 %v527, %v529
        %v531 = vrot.slane %v464, %v530
        %v532 = vcombine.high %v531, %v531
        %v534 = vunpack.c.l.s4 1983009808
        %v535 = vunpack.c.0.s8 %v534
        %v536 = vlaneseq
        %v537 = vshrl.u32 %v536, 7
        %v538 = vsub.s32 %v535, %v537
        %v539 = vrot.slane %v465, %v538
        %v541 = vunpack.c.l.s4 1983009808
        %v542 = vunpack.c.0.s8 %v541
        %v543 = vlaneseq
        %v544 = vshrl.u32 %v543, 7
        %v545 = vsub.s32 %v542, %v544
        %v546 = vrot.slane %v466, %v545
        %v547 = vcombine.high %v546, %v546
        %v549 = vunpack.c.l.s4 1983009808
        %v550 = vunpack.c.0.s8 %v549
        %v551 = vlaneseq
        %v552 = vshrl.u32 %v551, 7
        %v553 = vsub.s32 %v550, %v552
        %v554 = vrot.slane %v467, %v553
        %v556 = vunpack.c.l.s4 1983009808
        %v557 = vunpack.c.0.s8 %v556
        %v558 = vlaneseq
        %v559 = vshrl.u32 %v558, 7
        %v560 = vsub.s32 %v557, %v559
        %v561 = vrot.slane %v468, %v560
        %v562 = vcombine.high %v561, %v561
        %v564 = vunpack.c.l.s4 1983009808
        %v565 = vunpack.c.0.s8 %v564
        %v566 = vlaneseq
        %v567 = vshrl.u32 %v566, 7
        %v568 = vsub.s32 %v565, %v567
        %v569 = vrot.slane %v469, %v568
        %v571 = vunpack.c.l.s4 1983009808
        %v572 = vunpack.c.0.s8 %v571
        %v573 = vlaneseq
        %v574 = vshrl.u32 %v573, 7
        %v575 = vsub.s32 %v572, %v574
        %v576 = vrot.slane %v470, %v575
        %v577 = vcombine.high %v576, %v576
        %v579 = vunpack.c.l.s4 1983009808
        %v580 = vunpack.c.0.s8 %v579
        %v581 = vlaneseq
        %v582 = vshrl.u32 %v581, 7
        %v583 = vsub.s32 %v580, %v582
        %v584 = vrot.slane %v471, %v583
        %v586 = vunpack.c.l.s4 1983009808
        %v587 = vunpack.c.0.s8 %v586
        %v588 = vlaneseq
        %v589 = vshrl.u32 %v588, 7
        %v590 = vsub.s32 %v587, %v589
        %v591 = vrot.slane %v472, %v590
        %v592 = vcombine.high %v591, %v591
        %v594 = vunpack.c.l.s4 1983009808
        %v595 = vunpack.c.0.s8 %v594
        %v596 = vlaneseq
        %v597 = vshrl.u32 %v596, 7
        %v598 = vsub.s32 %v595, %v597
        %v599 = vrot.slane %v473, %v598
        %v601 = vunpack.c.l.s4 1983009808
        %v602 = vunpack.c.0.s8 %v601
        %v603 = vlaneseq
        %v604 = vshrl.u32 %v603, 7
        %v605 = vsub.s32 %v602, %v604
        %v606 = vrot.slane %v474, %v605
        %v607 = vcombine.high %v606, %v606
        %v609 = vunpack.c.l.s4 1983009808
        %v610 = vunpack.c.0.s8 %v609
        %v611 = vlaneseq
        %v612 = vshrl.u32 %v611, 7
        %v613 = vsub.s32 %v610, %v612
        %v614 = vrot.slane %v475, %v613
        %v616 = vunpack.c.l.s4 1983009808
        %v617 = vunpack.c.0.s8 %v616
        %v618 = vlaneseq
        %v619 = vshrl.u32 %v618, 7
        %v620 = vsub.s32 %v617, %v619
        %v621 = vrot.slane %v476, %v620
        %v622 = vcombine.high %v621, %v621
        %v624 = vunpack.c.l.s4 1983009808
        %v625 = vunpack.c.0.s8 %v624
        %v626 = vlaneseq
        %v627 = vshrl.u32 %v626, 7
        %v628 = vsub.s32 %v625, %v627
        %v629 = vrot.slane %v477, %v628
        %v630 = vcombine.low %v516, %v517
        %v631 = vcombine.low %v524, %v531
        %v633 = vunpack.c.l.s4 1983009808
        %v634 = vunpack.c.0.s8 %v633
        %v635 = vlaneseq
        %v636 = vshrl.u32 %v635, 7
        %v637 = vsub.s32 %v634, %v636
        %v638 = vrot.slane %v630, %v637
        %v640 = vunpack.c.l.s4 1983009808
        %v641 = vunpack.c.0.s8 %v640
        %v642 = vlaneseq
        %v643 = vshrl.u32 %v642, 7
        %v644 = vsub.s32 %v641, %v643
        %v645 = vrot.slane %v631, %v644
        %v646 = vcombine.low %v638, %v645
        %v647 = vcombine.low %v532, %v539
        %v648 = vcombine.low %v546, %v547
        %v650 = vunpack.c.l.s4 1983009808
        %v651 = vunpack.c.0.s8 %v650
        %v652 = vlaneseq
        %v653 = vshrl.u32 %v652, 7
        %v654 = vsub.s32 %v651, %v653
        %v655 = vrot.slane %v647, %v654
        %v657 = vunpack.c.l.s4 1983009808
        %v658 = vunpack.c.0.s8 %v657
        %v659 = vlaneseq
        %v660 = vshrl.u32 %v659, 7
        %v661 = vsub.s32 %v658, %v660
        %v662 = vrot.slane %v648, %v661
        %v663 = vcombine.low %v655, %v662
        %v664 = vcombine.low %v554, %v561
        %v665 = vcombine.low %v562, %v569
        %v667 = vunpack.c.l.s4 1983009808
        %v668 = vunpack.c.0.s8 %v667
        %v669 = vlaneseq
        %v670 = vshrl.u32 %v669, 7
        %v671 = vsub.s32 %v668, %v670
        %v672 = vrot.slane %v664, %v671
        %v674 = vunpack.c.l.s4 1983009808
        %v675 = vunpack.c.0.s8 %v674
        %v676 = vlaneseq
        %v677 = vshrl.u32 %v676, 7
        %v678 = vsub.s32 %v675, %v677
        %v679 = vrot.slane %v665, %v678
        %v680 = vcombine.low %v672, %v679
        %v681 = vcombine.low %v576, %v577
        %v682 = vcombine.low %v584, %v591
        %v684 = vunpack.c.l.s4 1983009808
        %v685 = vunpack.c.0.s8 %v684
        %v686 = vlaneseq
        %v687 = vshrl.u32 %v686, 7
        %v688 = vsub.s32 %v685, %v687
        %v689 = vrot.slane %v681, %v688
        %v691 = vunpack.c.l.s4 1983009808
        %v692 = vunpack.c.0.s8 %v691
        %v693 = vlaneseq
        %v694 = vshrl.u32 %v693, 7
        %v695 = vsub.s32 %v692, %v694
        %v696 = vrot.slane %v682, %v695
        %v697 = vcombine.low %v689, %v696
        %v698 = vcombine.low %v592, %v599
        %v699 = vcombine.low %v606, %v607
        %v701 = vunpack.c.l.s4 1983009808
        %v702 = vunpack.c.0.s8 %v701
        %v703 = vlaneseq
        %v704 = vshrl.u32 %v703, 7
        %v705 = vsub.s32 %v702, %v704
        %v706 = vrot.slane %v698, %v705
        %v708 = vunpack.c.l.s4 1983009808
        %v709 = vunpack.c.0.s8 %v708
        %v710 = vlaneseq
        %v711 = vshrl.u32 %v710, 7
        %v712 = vsub.s32 %v709, %v711
        %v713 = vrot.slane %v699, %v712
        %v714 = vcombine.low %v706, %v713
        %v715 = vcombine.low %v614, %v621
        %v716 = vcombine.low %v622, %v629
        %v718 = vunpack.c.l.s4 1983009808
        %v719 = vunpack.c.0.s8 %v718
        %v720 = vlaneseq
        %v721 = vshrl.u32 %v720, 7
        %v722 = vsub.s32 %v719, %v721
        %v723 = vrot.slane %v715, %v722
        %v725 = vunpack.c.l.s4 1983009808
        %v726 = vunpack.c.0.s8 %v725
        %v727 = vlaneseq
        %v728 = vshrl.u32 %v727, 7
        %v729 = vsub.s32 %v726, %v728
        %v730 = vrot.slane %v716, %v729
        %v731 = vcombine.low %v723, %v730
        %v754 = vunpack.c.l.b16 %v478
        %v755 = vunpack.c.l.b16 %v479
        %v756 = vunpack.c.l.b16 %v480
        %v757 = vunpack.c.l.b16 %v481
        %v758 = vunpack.c.l.b16 %v482
        %v759 = vunpack.c.l.b16 %v483
        %v760 = vunpack.c.l.b16 %v484
        %v761 = vunpack.c.l.b16 %v485
        %v762 = vunpack.c.l.b16 %v486
        %v763 = vunpack.c.l.b16 %v487
        %v764 = vunpack.c.l.b16 %v488
        %v765 = vunpack.c.l.b16 %v489
        %v766 = vunpack.c.l.b16 %v490
        %v767 = vunpack.c.l.b16 %v491
        %v768 = vunpack.c.l.b16 %v492
        %v769 = vunpack.c.l.b16 %v493
        %v770 = vpack.c.b16 %v755, %v754
        %v771 = vpack.c.b16 %v757, %v756
        %v772 = vpack.c.b16 %v759, %v758
        %v773 = vpack.c.b16 %v761, %v760
        %v774 = vpack.c.b16 %v763, %v762
        %v775 = vpack.c.b16 %v765, %v764
        %v776 = vpack.c.b16 %v767, %v766
        %v777 = vpack.c.b16 %v769, %v768
        %786 = vmatprep.subr.bf16.mxu0 0
        %787 = vmatpush1.bf16.msra.mxu0 %v777
        %788 = vmatprep.subr.bf16.mxu0 0
        %789 = vmatpush1.bf16.msra.mxu0 %v776
        %790 = vmatprep.subr.bf16.mxu0 0
        %791 = vmatpush1.bf16.msra.mxu0 %v775
        %792 = vmatprep.subr.bf16.mxu0 0
        %793 = vmatpush1.bf16.msra.mxu0 %v774
        %794 = vmatprep.subr.bf16.mxu0 0
        %795 = vmatpush1.bf16.msra.mxu0 %v773
        %796 = vmatprep.subr.bf16.mxu0 0
        %797 = vmatpush1.bf16.msra.mxu0 %v772
        %798 = vmatprep.subr.bf16.mxu0 0
        %799 = vmatpush1.bf16.msra.mxu0 %v771
        %800 = vmatprep.subr.bf16.mxu0 0
        %801 = vmatpush1.bf16.msra.mxu0 %v770
        %802 = vmatprep.subr.bf16.mxu0 0
        %803 = vmatpush2.bf16.msra.mxu0 0
        %804 = vmatprep.subr.bf16.mxu0 0
        %805 = vmatpush2.bf16.msra.mxu0 0
        %806 = vmatprep.subr.bf16.mxu0 0
        %807 = vmatpush2.bf16.msra.mxu0 0
        %808 = vmatprep.subr.bf16.mxu0 0
        %809 = vmatpush2.bf16.msra.mxu0 0
        %810 = vmatprep.subr.bf16.mxu0 0
        %811 = vmatpush2.bf16.msra.mxu0 0
        %812 = vmatprep.subr.bf16.mxu0 0
        %813 = vmatpush2.bf16.msra.mxu0 0
        %814 = vmatprep.subr.bf16.mxu0 0
        %815 = vmatpush2.bf16.msra.mxu0 0
        %816 = vmatprep.subr.bf16.mxu0 0
        %817 = vmatpush2.bf16.msra.mxu0 0
        %818 = vmatprep.mubr.bf16.mxu0 0
        %819 = vmatmul.mubr.bf16.gmra.mxu0 %v646
        %v820 = vpop.f32.mrf.mxu0
        %v821 = vadd.f32 0.0, %v820
        %v822 = vpop.f32.mrf.mxu0
        %v823 = vpop.f32.mrf.mxu0
        %v824 = vadd.f32 0.0, %v823
        %v825 = vpop.f32.mrf.mxu0
        %826 = vmatprep.mubr.bf16.mxu0 0
        %827 = vmatmul.mubr.bf16.gmra.mxu0 %v663
        %v828 = vpop.f32.mrf.mxu0
        %v829 = vadd.f32 0.0, %v828
        %v830 = vpop.f32.mrf.mxu0
        %v831 = vpop.f32.mrf.mxu0
        %v832 = vadd.f32 0.0, %v831
        %v833 = vpop.f32.mrf.mxu0
        %834 = vmatprep.mubr.bf16.mxu0 0
        %835 = vmatmul.mubr.bf16.gmra.mxu0 %v680
        %v836 = vpop.f32.mrf.mxu0
        %v837 = vadd.f32 0.0, %v836
        %v838 = vpop.f32.mrf.mxu0
        %v839 = vpop.f32.mrf.mxu0
        %v840 = vadd.f32 0.0, %v839
        %v841 = vpop.f32.mrf.mxu0
        %842 = vmatprep.mubr.bf16.mxu0 0
        %843 = vmatmul.mubr.bf16.gmra.mxu0 %v697
        %v844 = vpop.f32.mrf.mxu0
        %v845 = vadd.f32 0.0, %v844
        %v846 = vpop.f32.mrf.mxu0
        %v847 = vpop.f32.mrf.mxu0
        %v848 = vadd.f32 0.0, %v847
        %v849 = vpop.f32.mrf.mxu0
        %850 = vmatprep.mubr.bf16.mxu0 0
        %851 = vmatmul.mubr.bf16.gmra.mxu0 %v714
        %v852 = vpop.f32.mrf.mxu0
        %v853 = vadd.f32 0.0, %v852
        %v854 = vpop.f32.mrf.mxu0
        %v855 = vpop.f32.mrf.mxu0
        %v856 = vadd.f32 0.0, %v855
        %v857 = vpop.f32.mrf.mxu0
        %858 = vmatprep.mubr.bf16.mxu0 0
        %859 = vmatmul.mubr.bf16.gmra.mxu0 %v731
        %v860 = vpop.f32.mrf.mxu0
        %v861 = vadd.f32 0.0, %v860
        %v862 = vpop.f32.mrf.mxu0
        %v863 = vpop.f32.mrf.mxu0
        %v864 = vadd.f32 0.0, %v863
        %v865 = vpop.f32.mrf.mxu0
        %866 = vdwg.mxu0
        %v879 = vcombine.high %v821, %v821
        %v880 = vcombine.high %v824, %v824
        %v881 = vcombine.high %v829, %v829
        %v882 = vcombine.high %v832, %v832
        %v883 = vcombine.high %v837, %v837
        %v884 = vcombine.high %v840, %v840
        %v885 = vcombine.high %v845, %v845
        %v886 = vcombine.high %v848, %v848
        %v887 = vcombine.high %v853, %v853
        %v888 = vcombine.high %v856, %v856
        %v889 = vcombine.high %v861, %v861
        %v890 = vcombine.high %v864, %v864
        %v895 = vcombine.low %v821, %v879
        %v896 = vcombine.low %v880, %v829
        %v897 = vcombine.low %v832, %v882
        %v898 = vcombine.low %v883, %v840
        %v899 = vcombine.low %v845, %v885
        %v900 = vcombine.low %v886, %v853
        %v901 = vcombine.low %v856, %v888
        %v902 = vcombine.low %v889, %v864
        %vm911 = vcmask 261120
        %v912 = vsel %vm911, %v895, -inf
        %vm913 = vcmask 257024
        %v914 = vsel %vm913, %v824, -inf
        %v915 = vmax.f32 %v912, %v914
        %v916 = vrot.slane %v915, 4
        %v917 = vmax.f32 %v915, %v916
        %v918 = vrot.slane %v917, 2
        %v919 = vmax.f32 %v917, %v918
        %v920 = vrot.slane %v919, 1
        %v921 = vmax.f32 %v919, %v920
        %v922 = vsel %vm911, %v896, -inf
        %v923 = vsel %vm913, %v881, -inf
        %v924 = vmax.f32 %v922, %v923
        %v925 = vrot.slane %v924, 4
        %v926 = vmax.f32 %v924, %v925
        %v927 = vrot.slane %v926, 2
        %v928 = vmax.f32 %v926, %v927
        %v929 = vrot.slane %v928, 1
        %v930 = vmax.f32 %v928, %v929
        %v931 = vsel %vm911, %v897, -inf
        %v932 = vsel %vm913, %v837, -inf
        %v933 = vmax.f32 %v931, %v932
        %v934 = vrot.slane %v933, 4
        %v935 = vmax.f32 %v933, %v934
        %v936 = vrot.slane %v935, 2
        %v937 = vmax.f32 %v935, %v936
        %v938 = vrot.slane %v937, 1
        %v939 = vmax.f32 %v937, %v938
        %v940 = vsel %vm911, %v898, -inf
        %v941 = vsel %vm913, %v884, -inf
        %v942 = vmax.f32 %v940, %v941
        %v943 = vrot.slane %v942, 4
        %v944 = vmax.f32 %v942, %v943
        %v945 = vrot.slane %v944, 2
        %v946 = vmax.f32 %v944, %v945
        %v947 = vrot.slane %v946, 1
        %v948 = vmax.f32 %v946, %v947
        %v949 = vsel %vm911, %v899, -inf
        %v950 = vsel %vm913, %v848, -inf
        %v951 = vmax.f32 %v949, %v950
        %v952 = vrot.slane %v951, 4
        %v953 = vmax.f32 %v951, %v952
        %v954 = vrot.slane %v953, 2
        %v955 = vmax.f32 %v953, %v954
        %v956 = vrot.slane %v955, 1
        %v957 = vmax.f32 %v955, %v956
        %v958 = vsel %vm911, %v900, -inf
        %v959 = vsel %vm913, %v887, -inf
        %v960 = vmax.f32 %v958, %v959
        %v961 = vrot.slane %v960, 4
        %v962 = vmax.f32 %v960, %v961
        %v963 = vrot.slane %v962, 2
        %v964 = vmax.f32 %v962, %v963
        %v965 = vrot.slane %v964, 1
        %v966 = vmax.f32 %v964, %v965
        %v967 = vsel %vm911, %v901, -inf
        %v968 = vsel %vm913, %v861, -inf
        %v969 = vmax.f32 %v967, %v968
        %v970 = vrot.slane %v969, 4
        %v971 = vmax.f32 %v969, %v970
        %v972 = vrot.slane %v971, 2
        %v973 = vmax.f32 %v971, %v972
        %v974 = vrot.slane %v973, 1
        %v975 = vmax.f32 %v973, %v974
        %v976 = vsel %vm911, %v902, -inf
        %v977 = vsel %vm913, %v890, -inf
        %v978 = vmax.f32 %v976, %v977
        %v979 = vrot.slane %v978, 4
        %v980 = vmax.f32 %v978, %v979
        %v981 = vrot.slane %v980, 2
        %v982 = vmax.f32 %v980, %v981
        %v983 = vrot.slane %v982, 1
        %v984 = vmax.f32 %v982, %v983
        %v985 = vld [vmem:[%s2] sm:$0x1]
        %v987 = vlaneseq
        %v988 = vshrl.u32 %v987, 7
        %v989 = vsub.s32 0, %v988
        %v990 = vrot.slane %v985, %v989
        %v992 = vadd.f32 %v921, %v990
        %v993 = vadd.f32 %v930, %v990
        %v994 = vadd.f32 %v939, %v990
        %v995 = vadd.f32 %v948, %v990
        %v996 = vadd.f32 %v957, %v990
        %v997 = vadd.f32 %v966, %v990
        %v998 = vadd.f32 %v975, %v990
        %v999 = vadd.f32 %v984, %v990
        %v1000 = vld [vmem:[%s460] sm:$0xff]
        %v1001 = vld [vmem:[%s4] sm:$0xff]
        %v1002 = vld [vmem:[%s4 + $0x8] sm:$0xff]
        %v1003 = vld [vmem:[%s4 + $0x10] sm:$0xff]
        %v1004 = vld [vmem:[%s4 + $0x18] sm:$0xff]
        %v1006 = vsel %vm911, %v1000, 0
        %1008 = vmatprep.subr.mxu0 0.0
        %1009 = vmatpush1.msra.mxu0 0.0
        %1010 = vmatprep.subr.mxu0 0.0
        %1011 = vmatpush1.msra.mxu0 0.0
        %1012 = vmatprep.subr.mxu0 0.0
        %1013 = vmatpush1.msra.mxu0 0.0
        %1014 = vmatprep.subr.mxu0 0.0
        %1015 = vmatpush1.msra.mxu0 0.0
        %1016 = vmatprep.subr.mxu0 0.0
        %1017 = vmatpush1.msra.mxu0 0.0
        %1018 = vmatprep.subr.mxu0 0.0
        %1019 = vmatpush1.msra.mxu0 0.0
        %1020 = vmatprep.subr.mxu0 0.0
        %1021 = vmatpush1.msra.mxu0 0.0
        %1022 = vmatprep.subr.mxu0 0.0
        %1023 = vmatpush1.msra.mxu0 0.0
        %1024 = vmatprep.subr.mxu0 0.0
        %1025 = vmatpush1.msra.mxu0 0.0
        %1026 = vmatprep.subr.mxu0 0.0
        %1027 = vmatpush1.msra.mxu0 0.0
        %1028 = vmatprep.subr.mxu0 0.0
        %1029 = vmatpush1.msra.mxu0 0.0
        %1030 = vmatprep.subr.mxu0 0.0
        %1031 = vmatpush1.msra.mxu0 0.0
        %1032 = vmatprep.subr.mxu0 0.0
        %1033 = vmatpush1.msra.mxu0 %v1004
        %1034 = vmatprep.subr.mxu0 0.0
        %1035 = vmatpush1.msra.mxu0 %v1003
        %1036 = vmatprep.subr.mxu0 0.0
        %1037 = vmatpush1.msra.mxu0 %v1002
        %1038 = vmatprep.subr.mxu0 0.0
        %1039 = vmatpush1.msra.mxu0 %v1001
        %1040 = vmatprep.subr.mxu0 0.0
        %1041 = vmatpush2.msra.mxu0 0.0
        %1042 = vmatprep.subr.mxu0 0.0
        %1043 = vmatpush2.msra.mxu0 0.0
        %1044 = vmatprep.subr.mxu0 0.0
        %1045 = vmatpush2.msra.mxu0 0.0
        %1046 = vmatprep.subr.mxu0 0.0
        %1047 = vmatpush2.msra.mxu0 0.0
        %1048 = vmatprep.subr.mxu0 0.0
        %1049 = vmatpush2.msra.mxu0 0.0
        %1050 = vmatprep.subr.mxu0 0.0
        %1051 = vmatpush2.msra.mxu0 0.0
        %1052 = vmatprep.subr.mxu0 0.0
        %1053 = vmatpush2.msra.mxu0 0.0
        %1054 = vmatprep.subr.mxu0 0.0
        %1055 = vmatpush2.msra.mxu0 0.0
        %1056 = vmatprep.subr.mxu0 0.0
        %1057 = vmatpush2.msra.mxu0 0.0
        %1058 = vmatprep.subr.mxu0 0.0
        %1059 = vmatpush2.msra.mxu0 0.0
        %1060 = vmatprep.subr.mxu0 0.0
        %1061 = vmatpush2.msra.mxu0 0.0
        %1062 = vmatprep.subr.mxu0 0.0
        %1063 = vmatpush2.msra.mxu0 0.0
        %1064 = vmatprep.subr.mxu0 0.0
        %1065 = vmatpush2.msra.mxu0 0.0
        %1066 = vmatprep.subr.mxu0 0.0
        %1067 = vmatpush2.msra.mxu0 0.0
        %1068 = vmatprep.subr.mxu0 0.0
        %1069 = vmatpush2.msra.mxu0 0.0
        %1070 = vmatprep.subr.mxu0 0.0
        %1071 = vmatpush2.msra.mxu0 0.0
        %1072 = vmatprep.mubr.f32.mxu0 0.0
        %1073 = vmatmul.mubr.f32.gmra.mxu0 %v1006
        %v1074 = vpop.f32.mrf.mxu0
        %v1075 = vadd.f32 0.0, %v1074
        %v1076 = vpop.f32.mrf.mxu0
        %1077 = vdwg.mxu0
        %v1086 = vrot.slane %v993, 7
        %vm1087 = vcmask 1041409
        %v1088 = vsel %vm1087, %v1086, %v992
        %v1089 = vrot.slane %v994, 6
        %vm1090 = vcmask 1042434
        %v1091 = vsel %vm1090, %v1089, %v1088
        %v1092 = vrot.slane %v995, 5
        %vm1093 = vcmask 1043459
        %v1094 = vsel %vm1093, %v1092, %v1091
        %v1095 = vrot.slane %v996, 4
        %vm1096 = vcmask 1044484
        %v1097 = vsel %vm1096, %v1095, %v1094
        %v1098 = vrot.slane %v997, 3
        %vm1099 = vcmask 1045509
        %v1100 = vsel %vm1099, %v1098, %v1097
        %v1101 = vrot.slane %v998, 2
        %vm1102 = vcmask 1046534
        %v1103 = vsel %vm1102, %v1101, %v1100
        %v1104 = vrot.slane %v999, 1
        %vm1105 = vcmask 1047559
        %v1106 = vsel %vm1105, %v1104, %v1103
        %1107 = vrot.lane.b32.xlu0 %v1106, 32
        %v1108 = vpop.permute.xlu0 %1107
        %v1110 = vsel %vm911, %v1075, %v1108
        %v1111 = vld [vmem:[%s5] sm:$0xff]
        %v1112 = vld [vmem:[%s5 + $0x8] sm:$0xff]
        %v1113 = vld [vmem:[%s5 + $0x10] sm:$0xff]
        %v1114 = vld [vmem:[%s5 + $0x18] sm:$0xff]
        %v1115 = vld [vmem:[%s5 + $0x20] sm:$0xff]
        %v1116 = vld [vmem:[%s5 + $0x28] sm:$0xff]
        %v1117 = vld [vmem:[%s5 + $0x30] sm:$0xff]
        %v1118 = vld [vmem:[%s5 + $0x38] sm:$0xff]
        %v1119 = vld [vmem:[%s6] sm:$0x1]
        %v1120 = vld [vmem:[%s7] sm:$0xff]
        %v1121 = vld [vmem:[%s7 + $0x8] sm:$0xff]
        %v1122 = vld [vmem:[%s7 + $0x10] sm:$0xff]
        %v1123 = vld [vmem:[%s7 + $0x18] sm:$0xff]
        %v1124 = vld [vmem:[%s7 + $0x20] sm:$0xff]
        %v1125 = vld [vmem:[%s7 + $0x28] sm:$0xff]
        %v1126 = vld [vmem:[%s7 + $0x30] sm:$0xff]
        %v1127 = vld [vmem:[%s7 + $0x38] sm:$0xff]
        %v1128 = vld [vmem:[%s8] sm:$0x1]
        %v1130 = vlaneseq
        %v1131 = vshrl.u32 %v1130, 7
        %v1132 = vsub.s32 0, %v1131
        %v1133 = vrot.slane %v1119, %v1132
        %vm1135 = vcmask 523264
        %v1137 = vsel %vm1135, %v1110, 0
        %1139 = vmatprep.subr.mxu0 0.0
        %1140 = vmatpush1.msra.mxu0 0.0
        %1141 = vmatprep.subr.mxu0 0.0
        %1142 = vmatpush1.msra.mxu0 0.0
        %1143 = vmatprep.subr.mxu0 0.0
        %1144 = vmatpush1.msra.mxu0 0.0
        %1145 = vmatprep.subr.mxu0 0.0
        %1146 = vmatpush1.msra.mxu0 0.0
        %1147 = vmatprep.subr.mxu0 0.0
        %1148 = vmatpush1.msra.mxu0 0.0
        %1149 = vmatprep.subr.mxu0 0.0
        %1150 = vmatpush1.msra.mxu0 0.0
        %1151 = vmatprep.subr.mxu0 0.0
        %1152 = vmatpush1.msra.mxu0 0.0
        %1153 = vmatprep.subr.mxu0 0.0
        %1154 = vmatpush1.msra.mxu0 0.0
        %1155 = vmatprep.subr.mxu0 0.0
        %1156 = vmatpush1.msra.mxu0 %v1118
        %1157 = vmatprep.subr.mxu0 0.0
        %1158 = vmatpush1.msra.mxu0 %v1117
        %1159 = vmatprep.subr.mxu0 0.0
        %1160 = vmatpush1.msra.mxu0 %v1116
        %1161 = vmatprep.subr.mxu0 0.0
        %1162 = vmatpush1.msra.mxu0 %v1115
        %1163 = vmatprep.subr.mxu0 0.0
        %1164 = vmatpush1.msra.mxu0 %v1114
        %1165 = vmatprep.subr.mxu0 0.0
        %1166 = vmatpush1.msra.mxu0 %v1113
        %1167 = vmatprep.subr.mxu0 0.0
        %1168 = vmatpush1.msra.mxu0 %v1112
        %1169 = vmatprep.subr.mxu0 0.0
        %1170 = vmatpush1.msra.mxu0 %v1111
        %1171 = vmatprep.subr.mxu0 0.0
        %1172 = vmatpush2.msra.mxu0 0.0
        %1173 = vmatprep.subr.mxu0 0.0
        %1174 = vmatpush2.msra.mxu0 0.0
        %1175 = vmatprep.subr.mxu0 0.0
        %1176 = vmatpush2.msra.mxu0 0.0
        %1177 = vmatprep.subr.mxu0 0.0
        %1178 = vmatpush2.msra.mxu0 0.0
        %1179 = vmatprep.subr.mxu0 0.0
        %1180 = vmatpush2.msra.mxu0 0.0
        %1181 = vmatprep.subr.mxu0 0.0
        %1182 = vmatpush2.msra.mxu0 0.0
        %1183 = vmatprep.subr.mxu0 0.0
        %1184 = vmatpush2.msra.mxu0 0.0
        %1185 = vmatprep.subr.mxu0 0.0
        %1186 = vmatpush2.msra.mxu0 0.0
        %1187 = vmatprep.subr.mxu0 0.0
        %1188 = vmatpush2.msra.mxu0 0.0
        %1189 = vmatprep.subr.mxu0 0.0
        %1190 = vmatpush2.msra.mxu0 0.0
        %1191 = vmatprep.subr.mxu0 0.0
        %1192 = vmatpush2.msra.mxu0 0.0
        %1193 = vmatprep.subr.mxu0 0.0
        %1194 = vmatpush2.msra.mxu0 0.0
        %1195 = vmatprep.subr.mxu0 0.0
        %1196 = vmatpush2.msra.mxu0 0.0
        %1197 = vmatprep.subr.mxu0 0.0
        %1198 = vmatpush2.msra.mxu0 0.0
        %1199 = vmatprep.subr.mxu0 0.0
        %1200 = vmatpush2.msra.mxu0 0.0
        %1201 = vmatprep.subr.mxu0 0.0
        %1202 = vmatpush2.msra.mxu0 0.0
        %1203 = vmatprep.mubr.f32.mxu0 0.0
        %1204 = vmatmul.mubr.f32.gmra.mxu0 %v1137
        %v1205 = vpop.f32.mrf.mxu0
        %v1206 = vadd.f32 %v1133, %v1205
        %v1207 = vpop.f32.mrf.mxu0
        %1208 = vdwg.mxu0
        %v1209 = vmax.f32 %v1206, 0.0
        %v1211 = vlaneseq
        %v1212 = vshrl.u32 %v1211, 7
        %v1213 = vsub.s32 0, %v1212
        %v1214 = vrot.slane %v1128, %v1213
        %1216 = vmatprep.subr.mxu0 0.0
        %1217 = vmatpush1.msra.mxu0 0.0
        %1218 = vmatprep.subr.mxu0 0.0
        %1219 = vmatpush1.msra.mxu0 0.0
        %1220 = vmatprep.subr.mxu0 0.0
        %1221 = vmatpush1.msra.mxu0 0.0
        %1222 = vmatprep.subr.mxu0 0.0
        %1223 = vmatpush1.msra.mxu0 0.0
        %1224 = vmatprep.subr.mxu0 0.0
        %1225 = vmatpush1.msra.mxu0 0.0
        %1226 = vmatprep.subr.mxu0 0.0
        %1227 = vmatpush1.msra.mxu0 0.0
        %1228 = vmatprep.subr.mxu0 0.0
        %1229 = vmatpush1.msra.mxu0 0.0
        %1230 = vmatprep.subr.mxu0 0.0
        %1231 = vmatpush1.msra.mxu0 0.0
        %1232 = vmatprep.subr.mxu0 0.0
        %1233 = vmatpush1.msra.mxu0 %v1127
        %1234 = vmatprep.subr.mxu0 0.0
        %1235 = vmatpush1.msra.mxu0 %v1126
        %1236 = vmatprep.subr.mxu0 0.0
        %1237 = vmatpush1.msra.mxu0 %v1125
        %1238 = vmatprep.subr.mxu0 0.0
        %1239 = vmatpush1.msra.mxu0 %v1124
        %1240 = vmatprep.subr.mxu0 0.0
        %1241 = vmatpush1.msra.mxu0 %v1123
        %1242 = vmatprep.subr.mxu0 0.0
        %1243 = vmatpush1.msra.mxu0 %v1122
        %1244 = vmatprep.subr.mxu0 0.0
        %1245 = vmatpush1.msra.mxu0 %v1121
        %1246 = vmatprep.subr.mxu0 0.0
        %1247 = vmatpush1.msra.mxu0 %v1120
        %1248 = vmatprep.subr.mxu0 0.0
        %1249 = vmatpush2.msra.mxu0 0.0
        %1250 = vmatprep.subr.mxu0 0.0
        %1251 = vmatpush2.msra.mxu0 0.0
        %1252 = vmatprep.subr.mxu0 0.0
        %1253 = vmatpush2.msra.mxu0 0.0
        %1254 = vmatprep.subr.mxu0 0.0
        %1255 = vmatpush2.msra.mxu0 0.0
        %1256 = vmatprep.subr.mxu0 0.0
        %1257 = vmatpush2.msra.mxu0 0.0
        %1258 = vmatprep.subr.mxu0 0.0
        %1259 = vmatpush2.msra.mxu0 0.0
        %1260 = vmatprep.subr.mxu0 0.0
        %1261 = vmatpush2.msra.mxu0 0.0
        %1262 = vmatprep.subr.mxu0 0.0
        %1263 = vmatpush2.msra.mxu0 0.0
        %1264 = vmatprep.subr.mxu0 0.0
        %1265 = vmatpush2.msra.mxu0 0.0
        %1266 = vmatprep.subr.mxu0 0.0
        %1267 = vmatpush2.msra.mxu0 0.0
        %1268 = vmatprep.subr.mxu0 0.0
        %1269 = vmatpush2.msra.mxu0 0.0
        %1270 = vmatprep.subr.mxu0 0.0
        %1271 = vmatpush2.msra.mxu0 0.0
        %1272 = vmatprep.subr.mxu0 0.0
        %1273 = vmatpush2.msra.mxu0 0.0
        %1274 = vmatprep.subr.mxu0 0.0
        %1275 = vmatpush2.msra.mxu0 0.0
        %1276 = vmatprep.subr.mxu0 0.0
        %1277 = vmatpush2.msra.mxu0 0.0
        %1278 = vmatprep.subr.mxu0 0.0
        %1279 = vmatpush2.msra.mxu0 0.0
        %1280 = vmatprep.mubr.f32.mxu0 0.0
        %1281 = vmatmul.mubr.f32.gmra.mxu0 %v1137
        %v1282 = vpop.f32.mrf.mxu0
        %v1283 = vadd.f32 %v1214, %v1282
        %v1284 = vpop.f32.mrf.mxu0
        %1285 = vdwg.mxu0
        %v1286 = vxor.u32 %v1283, 2147483648
        %v1287 = vmul.f32 %v1286, 1.442695
        %v1288 = vpow.pop %v1287
        %v1289 = vadd.f32 %v1288, 1.0
        %v1290 = vrcp.pop %v1289
        %v1291 = vmul.f32 1.0, %v1290
        %v1292 = vsub.f32 1.0, %v1291
        %v1293 = vmul.f32 %v1110, %v1292
        %v1294 = vmul.f32 %v1291, %v1209
        %v1295 = vadd.f32 %v1293, %v1294
        %v1296 = vld [vmem:[%s9] sm:$0xff]
        %v1297 = vld [vmem:[%s9 + $0x8] sm:$0xff]
        %v1298 = vld [vmem:[%s9 + $0x10] sm:$0xff]
        %v1299 = vld [vmem:[%s9 + $0x18] sm:$0xff]
        %v1300 = vld [vmem:[%s9 + $0x20] sm:$0xff]
        %v1301 = vld [vmem:[%s9 + $0x28] sm:$0xff]
        %v1302 = vld [vmem:[%s9 + $0x30] sm:$0xff]
        %v1303 = vld [vmem:[%s9 + $0x38] sm:$0xff]
        %v1304 = vld [vmem:[%s10] sm:$0x1]
        %v1305 = vld [vmem:[%s11] sm:$0xff]
        %v1306 = vld [vmem:[%s11 + $0x8] sm:$0xff]
        %v1307 = vld [vmem:[%s11 + $0x10] sm:$0xff]
        %v1308 = vld [vmem:[%s11 + $0x18] sm:$0xff]
        %v1309 = vld [vmem:[%s11 + $0x20] sm:$0xff]
        %v1310 = vld [vmem:[%s11 + $0x28] sm:$0xff]
        %v1311 = vld [vmem:[%s11 + $0x30] sm:$0xff]
        %v1312 = vld [vmem:[%s11 + $0x38] sm:$0xff]
        %v1313 = vld [vmem:[%s12] sm:$0x1]
        %v1315 = vlaneseq
        %v1316 = vshrl.u32 %v1315, 7
        %v1317 = vsub.s32 0, %v1316
        %v1318 = vrot.slane %v1304, %v1317
        %v1321 = vsel %vm1135, %v1295, 0
        %1323 = vmatprep.subr.mxu0 0.0
        %1324 = vmatpush1.msra.mxu0 0.0
        %1325 = vmatprep.subr.mxu0 0.0
        %1326 = vmatpush1.msra.mxu0 0.0
        %1327 = vmatprep.subr.mxu0 0.0
        %1328 = vmatpush1.msra.mxu0 0.0
        %1329 = vmatprep.subr.mxu0 0.0
        %1330 = vmatpush1.msra.mxu0 0.0
        %1331 = vmatprep.subr.mxu0 0.0
        %1332 = vmatpush1.msra.mxu0 0.0
        %1333 = vmatprep.subr.mxu0 0.0
        %1334 = vmatpush1.msra.mxu0 0.0
        %1335 = vmatprep.subr.mxu0 0.0
        %1336 = vmatpush1.msra.mxu0 0.0
        %1337 = vmatprep.subr.mxu0 0.0
        %1338 = vmatpush1.msra.mxu0 0.0
        %1339 = vmatprep.subr.mxu0 0.0
        %1340 = vmatpush1.msra.mxu0 %v1303
        %1341 = vmatprep.subr.mxu0 0.0
        %1342 = vmatpush1.msra.mxu0 %v1302
        %1343 = vmatprep.subr.mxu0 0.0
        %1344 = vmatpush1.msra.mxu0 %v1301
        %1345 = vmatprep.subr.mxu0 0.0
        %1346 = vmatpush1.msra.mxu0 %v1300
        %1347 = vmatprep.subr.mxu0 0.0
        %1348 = vmatpush1.msra.mxu0 %v1299
        %1349 = vmatprep.subr.mxu0 0.0
        %1350 = vmatpush1.msra.mxu0 %v1298
        %1351 = vmatprep.subr.mxu0 0.0
        %1352 = vmatpush1.msra.mxu0 %v1297
        %1353 = vmatprep.subr.mxu0 0.0
        %1354 = vmatpush1.msra.mxu0 %v1296
        %1355 = vmatprep.subr.mxu0 0.0
        %1356 = vmatpush2.msra.mxu0 0.0
        %1357 = vmatprep.subr.mxu0 0.0
        %1358 = vmatpush2.msra.mxu0 0.0
        %1359 = vmatprep.subr.mxu0 0.0
        %1360 = vmatpush2.msra.mxu0 0.0
        %1361 = vmatprep.subr.mxu0 0.0
        %1362 = vmatpush2.msra.mxu0 0.0
        %1363 = vmatprep.subr.mxu0 0.0
        %1364 = vmatpush2.msra.mxu0 0.0
        %1365 = vmatprep.subr.mxu0 0.0
        %1366 = vmatpush2.msra.mxu0 0.0
        %1367 = vmatprep.subr.mxu0 0.0
        %1368 = vmatpush2.msra.mxu0 0.0
        %1369 = vmatprep.subr.mxu0 0.0
        %1370 = vmatpush2.msra.mxu0 0.0
        %1371 = vmatprep.subr.mxu0 0.0
        %1372 = vmatpush2.msra.mxu0 0.0
        %1373 = vmatprep.subr.mxu0 0.0
        %1374 = vmatpush2.msra.mxu0 0.0
        %1375 = vmatprep.subr.mxu0 0.0
        %1376 = vmatpush2.msra.mxu0 0.0
        %1377 = vmatprep.subr.mxu0 0.0
        %1378 = vmatpush2.msra.mxu0 0.0
        %1379 = vmatprep.subr.mxu0 0.0
        %1380 = vmatpush2.msra.mxu0 0.0
        %1381 = vmatprep.subr.mxu0 0.0
        %1382 = vmatpush2.msra.mxu0 0.0
        %1383 = vmatprep.subr.mxu0 0.0
        %1384 = vmatpush2.msra.mxu0 0.0
        %1385 = vmatprep.subr.mxu0 0.0
        %1386 = vmatpush2.msra.mxu0 0.0
        %1387 = vmatprep.mubr.f32.mxu0 0.0
        %1388 = vmatmul.mubr.f32.gmra.mxu0 %v1321
        %v1389 = vpop.f32.mrf.mxu0
        %v1390 = vadd.f32 %v1318, %v1389
        %v1391 = vpop.f32.mrf.mxu0
        %1392 = vdwg.mxu0
        %v1393 = vmax.f32 %v1390, 0.0
        %v1395 = vlaneseq
        %v1396 = vshrl.u32 %v1395, 7
        %v1397 = vsub.s32 0, %v1396
        %v1398 = vrot.slane %v1313, %v1397
        %1400 = vmatprep.subr.mxu0 0.0
        %1401 = vmatpush1.msra.mxu0 0.0
        %1402 = vmatprep.subr.mxu0 0.0
        %1403 = vmatpush1.msra.mxu0 0.0
        %1404 = vmatprep.subr.mxu0 0.0
        %1405 = vmatpush1.msra.mxu0 0.0
        %1406 = vmatprep.subr.mxu0 0.0
        %1407 = vmatpush1.msra.mxu0 0.0
        %1408 = vmatprep.subr.mxu0 0.0
        %1409 = vmatpush1.msra.mxu0 0.0
        %1410 = vmatprep.subr.mxu0 0.0
        %1411 = vmatpush1.msra.mxu0 0.0
        %1412 = vmatprep.subr.mxu0 0.0
        %1413 = vmatpush1.msra.mxu0 0.0
        %1414 = vmatprep.subr.mxu0 0.0
        %1415 = vmatpush1.msra.mxu0 0.0
        %1416 = vmatprep.subr.mxu0 0.0
        %1417 = vmatpush1.msra.mxu0 %v1312
        %1418 = vmatprep.subr.mxu0 0.0
        %1419 = vmatpush1.msra.mxu0 %v1311
        %1420 = vmatprep.subr.mxu0 0.0
        %1421 = vmatpush1.msra.mxu0 %v1310
        %1422 = vmatprep.subr.mxu0 0.0
        %1423 = vmatpush1.msra.mxu0 %v1309
        %1424 = vmatprep.subr.mxu0 0.0
        %1425 = vmatpush1.msra.mxu0 %v1308
        %1426 = vmatprep.subr.mxu0 0.0
        %1427 = vmatpush1.msra.mxu0 %v1307
        %1428 = vmatprep.subr.mxu0 0.0
        %1429 = vmatpush1.msra.mxu0 %v1306
        %1430 = vmatprep.subr.mxu0 0.0
        %1431 = vmatpush1.msra.mxu0 %v1305
        %1432 = vmatprep.subr.mxu0 0.0
        %1433 = vmatpush2.msra.mxu0 0.0
        %1434 = vmatprep.subr.mxu0 0.0
        %1435 = vmatpush2.msra.mxu0 0.0
        %1436 = vmatprep.subr.mxu0 0.0
        %1437 = vmatpush2.msra.mxu0 0.0
        %1438 = vmatprep.subr.mxu0 0.0
        %1439 = vmatpush2.msra.mxu0 0.0
        %1440 = vmatprep.subr.mxu0 0.0
        %1441 = vmatpush2.msra.mxu0 0.0
        %1442 = vmatprep.subr.mxu0 0.0
        %1443 = vmatpush2.msra.mxu0 0.0
        %1444 = vmatprep.subr.mxu0 0.0
        %1445 = vmatpush2.msra.mxu0 0.0
        %1446 = vmatprep.subr.mxu0 0.0
        %1447 = vmatpush2.msra.mxu0 0.0
        %1448 = vmatprep.subr.mxu0 0.0
        %1449 = vmatpush2.msra.mxu0 0.0
        %1450 = vmatprep.subr.mxu0 0.0
        %1451 = vmatpush2.msra.mxu0 0.0
        %1452 = vmatprep.subr.mxu0 0.0
        %1453 = vmatpush2.msra.mxu0 0.0
        %1454 = vmatprep.subr.mxu0 0.0
        %1455 = vmatpush2.msra.mxu0 0.0
        %1456 = vmatprep.subr.mxu0 0.0
        %1457 = vmatpush2.msra.mxu0 0.0
        %1458 = vmatprep.subr.mxu0 0.0
        %1459 = vmatpush2.msra.mxu0 0.0
        %1460 = vmatprep.subr.mxu0 0.0
        %1461 = vmatpush2.msra.mxu0 0.0
        %1462 = vmatprep.subr.mxu0 0.0
        %1463 = vmatpush2.msra.mxu0 0.0
        %1464 = vmatprep.mubr.f32.mxu0 0.0
        %1465 = vmatmul.mubr.f32.gmra.mxu0 %v1321
        %v1466 = vpop.f32.mrf.mxu0
        %v1467 = vadd.f32 %v1398, %v1466
        %v1468 = vpop.f32.mrf.mxu0
        %1469 = vdwg.mxu0
        %v1470 = vxor.u32 %v1467, 2147483648
        %v1471 = vmul.f32 %v1470, 1.442695
        %v1472 = vpow.pop %v1471
        %v1473 = vadd.f32 %v1472, 1.0
        %v1474 = vrcp.pop %v1473
        %v1475 = vmul.f32 1.0, %v1474
        %v1476 = vsub.f32 1.0, %v1475
        %v1477 = vmul.f32 %v1295, %v1476
        %v1478 = vmul.f32 %v1475, %v1393
        %v1479 = vadd.f32 %v1477, %v1478
        %1480 = vst.msk [vmem:[%s449] sm:$0xff] %vm1135, %v1479
        %s1481 = sand.u32 %s318, 1
        %s1482 = scalar_lea.sflag [#allocation3], %s1481
        %s1483 = sand.u32 %s318, 1
        %s1484 = smul.addr %s1483, 8
        %s1485 = scalar_lea.vmem [#allocation2], %s1484
        // Predicated region
        $region73: #{embedding_forward.1} parent=71 // pred_check
          %p1486 = pneg %p328
        $region74: #{embedding_forward.1} parent=71 // pred_check_branch
          %1488 = sbr.rel (%p1486) target = $region76
        $region75: #{embedding_forward.1} parent=71 // pred_region
          %s1490 = ssub.s32 128, 128
          %1491 = vsyncadd %s1482, %s1490
          %s1492 = smul.addr %s27, 128
          %s1493 = scalar_lea.hbm %s13, %s1492
          %s1495 = sshll.u32 %s1485, 4
          %s1496 = int_to_ptr.vmem [resolvable:$true] %s1495
          %1498 = dma.vmem_to_hbm [thread:$0]  %s1496, 128, %s1493, %s1482
        $region76: #{embedding_forward.1} parent=71 // pred_fallthru
          _
      $region72: #{embedding_forward.1} parent=5 // pred_fallthru
        _
      %p1499 = scmp.le.s32.totalorder 2, %s22
      // Predicated region
      $region77: #{embedding_forward.1} parent=5 // pred_check
        %p1500 = pneg %p1499
      $region78: #{embedding_forward.1} parent=5 // pred_check_branch
        %1502 = sbr.rel (%p1500) target = $region80
      $region79: #{embedding_forward.1} parent=5 // pred_region
        %s1503 = ssub.s32 %s22, 2
        // Predicated region
        $region81: #{embedding_forward.1} parent=79 // pred_check
          %p1504 = pneg %p334
        $region82: #{embedding_forward.1} parent=79 // pred_check_branch
          %1506 = sbr.rel (%p1504) target = $region84
        $region83: #{embedding_forward.1} parent=79 // pred_region
          %s1507 = sand.u32 %s319, 1
          %s1508 = scalar_lea.sflag [#allocation3], %s1507
          %s1509 = sand.u32 %s319, 1
          %s1510 = smul.addr %s1509, 8
          %s1511 = scalar_lea.vmem [#allocation2], %s1510
          %1512 = dma.done %s1508, 128
        $region84: #{embedding_forward.1} parent=79 // pred_fallthru
          _
      $region80: #{embedding_forward.1} parent=5 // pred_fallthru
        _
    $region6: #{embedding_forward.1} parent=1 // loop_footer
      %s26 = sadd.s32 1, %s22
    $region7: #{embedding_forward.1} parent=1 // loop_footer_branch
      %21 = sbr.rel target = $region3
    $region8: #{embedding_forward.1} parent=1 // loop_exit
      _
    %1513 = vsyncpa [#allocation3], 1
    %s1514 = scalar_lea.sflag [#allocation3], 1
    %1515 = vsyncpa %s1514, 1

</llo_original>
